<compile_context>
chip_gen: v5e
topology: v5e:2x2
jax: 0.10.0
libtpu: 0.0.40
codegen_flags: <defaults>
</compile_context>

<pallas_src>
import functools
import math

import jax
import jax.numpy as jnp
from jax.experimental import pallas as pl
from jax.experimental.pallas import tpu as pltpu


_DEFAULT_BLOCK_BYTES = 2 << 20   # ~2 MiB of x per grid step (mem-bound sweet spot)
_VMEM_CAP_BYTES = 48 << 20       # stay safely under v7x's 64 MiB physical VMEM
_MAX_LANE_TILE = 8192            # lane-axis tile cap for channels_first spatial tiling


def _round_up(x, m):
    return ((x + m - 1) // m) * m


def _cdiv(a, b):
    return -(-a // b)


def _sublane_multiple(dtype):
    # f32 -> 8, bf16 -> 16, int8/fp8 -> 32 (sub-32-bit dtypes pack along sublanes).
    return max(8, 32 // jnp.dtype(dtype).itemsize)


def _prefer_even_grid(total, tile, multiple):
    """Best-effort: nudge tile so the grid length is even (v7x has 2 TensorCores)."""
    nblk = _cdiv(total, tile)
    if nblk > 1 and nblk % 2 == 1:
        cand = _round_up(_cdiv(total, nblk + 1), multiple)
        if cand >= multiple and _cdiv(total, cand) % 2 == 0:
            return cand
    return tile


def _vmem_limit_bytes(block_bytes):
    # input + output blocks, double-buffered, plus slack for gamma/beta & internals.
    need = 4 * block_bytes + (4 << 20)
    return int(min(_VMEM_CAP_BYTES, max(16 << 20, need)))


# ---------------------------------------------------------------------------
# channels_last kernel: block = (tm tokens, full C).  Per-row stats via a
# cross-lane (XLU) reduce, rsqrt on the EUP, affine fused into the same pass.
# ---------------------------------------------------------------------------
def _ln_last_kernel(x_ref, g_ref, b_ref, o_ref, *, eps):
    x = x_ref[...].astype(jnp.float32)                        # (tm, C)
    mean = jnp.mean(x, axis=-1, keepdims=True)
    xc = x - mean
    var = jnp.mean(xc * xc, axis=-1, keepdims=True)           # two-pass (robust) variance
    inv = jax.lax.rsqrt(var + eps)                            # EUP slot
    g = g_ref[...].astype(jnp.float32)                        # (1, C)
    b = b_ref[...].astype(jnp.float32)
    o_ref[...] = (xc * inv * g + b).astype(o_ref.dtype)


def layer_norm_channels_last(x, gamma, beta, eps=1e-6,
                             block_bytes=_DEFAULT_BLOCK_BYTES):
    """LayerNorm over the last dim of x = (..., C)."""
    C = x.shape[-1]
    M = x.size // C
    x2 = x.reshape(M, C)
    itemsize = jnp.dtype(x.dtype).itemsize
    sub = _sublane_multiple(x.dtype)

    # Row tile from the VMEM byte budget (kept a sublane multiple).
    tm = max(sub, (block_bytes // (C * itemsize)) // sub * sub)
    if tm >= M:
        tm = _round_up(M, sub)                 # single block covers all rows
    else:
        tm = _prefer_even_grid(M, tm, sub)
    grid = (_cdiv(M, tm),)                     # ragged last block, rows are independent
    blk_bytes = tm * C * itemsize

    out = pl.pallas_call(
        functools.partial(_ln_last_kernel, eps=eps),
        out_shape=jax.ShapeDtypeStruct((M, C), x.dtype),
        grid=grid,
        in_specs=[
            pl.BlockSpec((tm, C), lambda i: (i, 0)),
            pl.BlockSpec((1, C), lambda i: (0, 0)),
            pl.BlockSpec((1, C), lambda i: (0, 0)),
        ],
        out_specs=pl.BlockSpec((tm, C), lambda i: (i, 0)),
        compiler_params=pltpu.CompilerParams(
            dimension_semantics=("parallel",),
            vmem_limit_bytes=_vmem_limit_bytes(blk_bytes),
        ),
    )(x2, gamma.reshape(1, C), beta.reshape(1, C))
    return out.reshape(x.shape)


# ---------------------------------------------------------------------------
# channels_first kernel: spatial positions sit on the 128-lane axis (lane-dense
# loads/stores); the C-reduction runs on sublanes.  Block is either
# (bb, C, HW) (several batch indices) or (1, C, tn) (spatial tiling).
# ---------------------------------------------------------------------------
def _ln_first_kernel(x_ref, g_ref, b_ref, o_ref, *, eps):
    x = x_ref[...].astype(jnp.float32)                        # (bb, C, tn)
    mean = jnp.mean(x, axis=1, keepdims=True)
    xc = x - mean
    var = jnp.mean(xc * xc, axis=1, keepdims=True)            # two-pass variance
    inv = jax.lax.rsqrt(var + eps)                            # EUP slot
    g = g_ref[...].astype(jnp.float32)                        # (1, C, 1)
    b = b_ref[...].astype(jnp.float32)
    o_ref[...] = (xc * inv * g + b).astype(o_ref.dtype)


def layer_norm_channels_first(x, gamma, beta, eps=1e-6,
                              block_bytes=_DEFAULT_BLOCK_BYTES):
    """Per-spatial-position LayerNorm over dim 1 of x = (B, C, *spatial)."""
    B, C = x.shape[0], x.shape[1]
    HW = math.prod(x.shape[2:])
    x3 = x.reshape(B, C, HW)
    itemsize = jnp.dtype(x.dtype).itemsize
    g3 = gamma.reshape(1, C, 1)
    b3 = beta.reshape(1, C, 1)
    slab_bytes = C * HW * itemsize

    if slab_bytes <= block_bytes:
        # Whole (C, HW) slab fits: pack several batch/frame indices per block.
        bb = min(B, max(1, block_bytes // slab_bytes))
        bb = _prefer_even_grid(B, bb, 1)
        grid = (_cdiv(B, bb),)
        in_block = (bb, C, HW)
        x_map = lambda i: (i, 0, 0)
        gb_map = lambda i: (0, 0, 0)
        blk_bytes = bb * slab_bytes
    else:
        # Tile the lane (spatial) axis in big 128-multiples; one batch index per block.
        tn = max(128, (block_bytes // (C * itemsize)) // 128 * 128)
        tn = min(tn, _MAX_LANE_TILE, _round_up(HW, 128))
        grid = (B, _cdiv(HW, tn))
        in_block = (1, C, tn)
        x_map = lambda b, j: (b, 0, j)
        gb_map = lambda b, j: (0, 0, 0)
        blk_bytes = C * tn * itemsize

    out = pl.pallas_call(
        functools.partial(_ln_first_kernel, eps=eps),
        out_shape=jax.ShapeDtypeStruct((B, C, HW), x.dtype),
        grid=grid,
        in_specs=[
            pl.BlockSpec(in_block, x_map),
            pl.BlockSpec((1, C, 1), gb_map),
            pl.BlockSpec((1, C, 1), gb_map),
        ],
        out_specs=pl.BlockSpec(in_block, x_map),
        compiler_params=pltpu.CompilerParams(
            dimension_semantics=("parallel",) * len(grid),
            vmem_limit_bytes=_vmem_limit_bytes(blk_bytes),
        ),
    )(x3, g3, b3)
    return out.reshape(x.shape)


# ---------------------------------------------------------------------------
# Module wrapper matching the PyTorch LayerNorm interface / semantics.
# ---------------------------------------------------------------------------
class LayerNorm:
    def __init__(self, normalized_shape, eps=1e-6, data_format="channels_last"):
        if data_format not in ("channels_last", "channels_first"):
            raise NotImplementedError
        self.weight = jnp.ones((normalized_shape,), jnp.float32)
        self.bias = jnp.zeros((normalized_shape,), jnp.float32)
        self.eps = eps
        self.data_format = data_format
        self.normalized_shape = (normalized_shape,)

    def __call__(self, x):
        if self.data_format == "channels_last":
            return layer_norm_channels_last(x, self.weight, self.bias, self.eps)
        return layer_norm_channels_first(x, self.weight, self.bias, self.eps)


if __name__ == "__main__":
    key = jax.random.PRNGKey(0)
    kx1, kx2, kx3, kw, kb = jax.random.split(key, 5)
    B, C, H, W, L = 2, 32, 16, 16, 8

    w = 1.0 + 0.1 * jax.random.normal(kw, (C,), jnp.float32)
    b = 0.1 * jax.random.normal(kb, (C,), jnp.float32)

    # --- channels_last on an NHWC image tensor ------------------------------
    ln_cl = LayerNorm(C, eps=1e-6, data_format="channels_last")
    ln_cl.weight, ln_cl.bias = w, b
    x_cl = jax.random.normal(kx1, (B, H, W, C), jnp.float32)
    out_cl = jax.block_until_ready(ln_cl(x_cl))
    mu = jnp.mean(x_cl, axis=-1, keepdims=True)
    var = jnp.mean((x_cl - mu) ** 2, axis=-1, keepdims=True)
    ref_cl = (x_cl - mu) / jnp.sqrt(var + 1e-6) * w + b
    assert out_cl.shape == x_cl.shape
    assert jnp.allclose(out_cl, ref_cl, atol=1e-4, rtol=1e-4), \
        float(jnp.max(jnp.abs(out_cl - ref_cl)))

    # --- channels_last on a (B, L, C) token tensor ---------------------------
    x_tok = jax.random.normal(kx2, (B, L, C), jnp.float32)
    out_tok = jax.block_until_ready(ln_cl(x_tok))
    mu = jnp.mean(x_tok, axis=-1, keepdims=True)
    var = jnp.mean((x_tok - mu) ** 2, axis=-1, keepdims=True)
    ref_tok = (x_tok - mu) / jnp.sqrt(var + 1e-6) * w + b
    assert jnp.allclose(out_tok, ref_tok, atol=1e-4, rtol=1e-4), \
        float(jnp.max(jnp.abs(out_tok - ref_tok)))

    # --- channels_first on an NCHW image tensor ------------------------------
    ln_cf = LayerNorm(C, eps=1e-6, data_format="channels_first")
    ln_cf.weight, ln_cf.bias = w, b
    x_cf = jax.random.normal(kx3, (B, C, H, W), jnp.float32)
    out_cf = jax.block_until_ready(ln_cf(x_cf))
    u = jnp.mean(x_cf, axis=1, keepdims=True)
    s = jnp.mean((x_cf - u) ** 2, axis=1, keepdims=True)
    ref_cf = (x_cf - u) / jnp.sqrt(s + 1e-6) * w[None, :, None, None] + b[None, :, None, None]
    assert out_cf.shape == x_cf.shape
    assert jnp.allclose(out_cf, ref_cf, atol=1e-4, rtol=1e-4), \
        float(jnp.max(jnp.abs(out_cf - ref_cf)))

    assert jnp.all(jnp.isfinite(out_cl)) and jnp.all(jnp.isfinite(out_tok)) and jnp.all(jnp.isfinite(out_cf))
    print("KERNEL_OK")
</pallas_src>

<mosaic_0001>
module attributes {stable_mosaic.version = 11 : i64} {
  func.func @_ln_last_kernel(%arg0: i32, %arg1: memref<512x32xf32, #tpu.memory_space<vmem>>, %arg2: memref<1x32xf32, #tpu.memory_space<vmem>>, %arg3: memref<1x32xf32, #tpu.memory_space<vmem>>, %arg4: memref<512x32xf32, #tpu.memory_space<vmem>>) attributes {dimension_semantics = [#tpu.dimension_semantics<parallel>], iteration_bounds = array<i64: 1>, scalar_prefetch = 0 : i64, scratch_operands = 0 : i64, tpu.core_type = #tpu.core_type<tc>, window_params = [{transform_indices = @transform_0, window_bounds = array<i64: 512, 32>}, {pipeline_mode = #tpu.pipeline_mode<synchronous>, transform_indices = @transform_1, window_bounds = array<i64: 1, 32>}, {pipeline_mode = #tpu.pipeline_mode<synchronous>, transform_indices = @transform_2, window_bounds = array<i64: 1, 32>}, {transform_indices = @transform_3, window_bounds = array<i64: 512, 32>}]} {
    %c0 = arith.constant 0 : index
    %c0_0 = arith.constant 0 : index
    %0 = vector.load %arg1[%c0, %c0_0] : memref<512x32xf32, #tpu.memory_space<vmem>>, vector<512x32xf32>
    %cst = arith.constant dense<0.000000e+00> : vector<512xf32>
    %1 = vector.multi_reduction <add>, %0, %cst [1] : vector<512x32xf32> to vector<512xf32>
    %2 = vector.shape_cast %1 : vector<512xf32> to vector<512x1xf32>
    %cst_1 = arith.constant 3.200000e+01 : f32
    %3 = vector.broadcast %cst_1 : f32 to vector<512x1xf32>
    %4 = arith.divf %2, %3 : vector<512x1xf32>
    %5 = vector.broadcast %4 : vector<512x1xf32> to vector<512x32xf32>
    %6 = arith.subf %0, %5 : vector<512x32xf32>
    %7 = arith.mulf %6, %6 : vector<512x32xf32>
    %cst_2 = arith.constant dense<0.000000e+00> : vector<512xf32>
    %8 = vector.multi_reduction <add>, %7, %cst_2 [1] : vector<512x32xf32> to vector<512xf32>
    %9 = vector.shape_cast %8 : vector<512xf32> to vector<512x1xf32>
    %cst_3 = arith.constant 3.200000e+01 : f32
    %10 = vector.broadcast %cst_3 : f32 to vector<512x1xf32>
    %11 = arith.divf %9, %10 : vector<512x1xf32>
    %cst_4 = arith.constant 9.99999997E-7 : f32
    %12 = vector.broadcast %cst_4 : f32 to vector<512x1xf32>
    %13 = arith.addf %11, %12 : vector<512x1xf32>
    %14 = math.rsqrt %13 : vector<512x1xf32>
    %c0_5 = arith.constant 0 : index
    %c0_6 = arith.constant 0 : index
    %15 = vector.load %arg2[%c0_5, %c0_6] : memref<1x32xf32, #tpu.memory_space<vmem>>, vector<1x32xf32>
    %c0_7 = arith.constant 0 : index
    %c0_8 = arith.constant 0 : index
    %16 = vector.load %arg3[%c0_7, %c0_8] : memref<1x32xf32, #tpu.memory_space<vmem>>, vector<1x32xf32>
    %17 = vector.broadcast %14 : vector<512x1xf32> to vector<512x32xf32>
    %18 = arith.mulf %6, %17 : vector<512x32xf32>
    %19 = vector.broadcast %15 : vector<1x32xf32> to vector<512x32xf32>
    %20 = arith.mulf %18, %19 : vector<512x32xf32>
    %21 = vector.broadcast %16 : vector<1x32xf32> to vector<512x32xf32>
    %22 = arith.addf %20, %21 : vector<512x32xf32>
    %c0_9 = arith.constant 0 : index
    %c0_10 = arith.constant 0 : index
    %23 = vector.load %arg4[%c0_9, %c0_10] : memref<512x32xf32, #tpu.memory_space<vmem>>, vector<512x32xf32>
    tpu.vector_store %arg4[%c0_9, %c0_10], %22 {strides = array<i32>} : memref<512x32xf32, #tpu.memory_space<vmem>>, vector<512x32xf32>,
    return
  }
  func.func @transform_0(%arg0: i32) -> (i32, i32) {
    %c0_i32 = arith.constant 0 : i32
    %c0_i32_0 = arith.constant 0 : i32
    return %arg0, %c0_i32 : i32, i32
  }
  func.func @transform_1(%arg0: i32) -> (i32, i32) {
    %c0_i32 = arith.constant 0 : i32
    %c0_i32_0 = arith.constant 0 : i32
    %c0_i32_1 = arith.constant 0 : i32
    return %c0_i32, %c0_i32_0 : i32, i32
  }
  func.func @transform_2(%arg0: i32) -> (i32, i32) {
    %c0_i32 = arith.constant 0 : i32
    %c0_i32_0 = arith.constant 0 : i32
    %c0_i32_1 = arith.constant 0 : i32
    return %c0_i32, %c0_i32_0 : i32, i32
  }
  func.func @transform_3(%arg0: i32) -> (i32, i32) {
    %c0_i32 = arith.constant 0 : i32
    %c0_i32_0 = arith.constant 0 : i32
    return %arg0, %c0_i32 : i32, i32
  }
}

</mosaic_0001>

<llo_original>
// kernel: tpu_custom_call.1
$region0: #{tpu_custom_call.1}
  #allocation0 [shape = 'u32[]', space=smem, size = 0x4, offset = 0x4, fixed_abs, tag = 'smem constant byte address 0x4 - core index']
  #allocation1 [shape = 'u32[72,128]{1,0:T(1,128)}', space=vmem, size = 0x9000, scoped, tag = 'internal scratch']
  %s0 = inlined_call_operand.vmem [shape: f32[512,32], index: 0, kind: input, shape index: {}]
  %s1 = inlined_call_operand.vmem [shape: f32[1,32], index: 1, kind: input, shape index: {}]
  %s2 = inlined_call_operand.vmem [shape: f32[1,32], index: 2, kind: input, shape index: {}]
  %s3 = inlined_call_operand.vmem [shape: f32[512,32], index: 3, kind: output, shape index: {}]
  %s4 = sld [smem:[#allocation0]]
  $region22: #{tpu_custom_call.1} parent=0
    _
  %s6 = ssub.s32 1, %s4
  %s7 = scalar_select 0, %s6, %s4
  // Predicated region
  $region2: #{tpu_custom_call.1} parent=0 // pred_check
    _
  $region3: #{tpu_custom_call.1} parent=0 // pred_check_branch
    %9 = sbr.rel (0) target = $region5
  $region4: #{tpu_custom_call.1} parent=0 // pred_region
    _
  $region5: #{tpu_custom_call.1} parent=0 // pred_fallthru
    _
  // Predicated region
  $region6: #{tpu_custom_call.1} parent=0 // pred_check
    _
  $region7: #{tpu_custom_call.1} parent=0 // pred_check_branch
    %11 = sbr.rel (0) target = $region9
  $region8: #{tpu_custom_call.1} parent=0 // pred_region
    _
  $region9: #{tpu_custom_call.1} parent=0 // pred_fallthru
    _
  // Predicated region
  $region10: #{tpu_custom_call.1} parent=0 // pred_check
    _
  $region11: #{tpu_custom_call.1} parent=0 // pred_check_branch
    %13 = sbr.rel (0) target = $region13
  $region12: #{tpu_custom_call.1} parent=0 // pred_region
    _
  $region13: #{tpu_custom_call.1} parent=0 // pred_fallthru
    _
  %v14 = vld [vmem:[%s0] sm:$0xff]
  %v15 = vld [vmem:[%s0 + $0x8] sm:$0xff]
  %v16 = vld [vmem:[%s0 + $0x10] sm:$0xff]
  %v17 = vld [vmem:[%s0 + $0x18] sm:$0xff]
  %v18 = vld [vmem:[%s0 + $0x20] sm:$0xff]
  %v19 = vld [vmem:[%s0 + $0x28] sm:$0xff]
  %v20 = vld [vmem:[%s0 + $0x30] sm:$0xff]
  %v21 = vld [vmem:[%s0 + $0x38] sm:$0xff]
  %v22 = vld [vmem:[%s0 + $0x40] sm:$0xff]
  %v23 = vld [vmem:[%s0 + $0x48] sm:$0xff]
  %v24 = vld [vmem:[%s0 + $0x50] sm:$0xff]
  %v25 = vld [vmem:[%s0 + $0x58] sm:$0xff]
  %v26 = vld [vmem:[%s0 + $0x60] sm:$0xff]
  %v27 = vld [vmem:[%s0 + $0x68] sm:$0xff]
  %v28 = vld [vmem:[%s0 + $0x70] sm:$0xff]
  %v29 = vld [vmem:[%s0 + $0x78] sm:$0xff]
  %v30 = vld [vmem:[%s0 + $0x80] sm:$0xff]
  %v31 = vld [vmem:[%s0 + $0x88] sm:$0xff]
  %v32 = vld [vmem:[%s0 + $0x90] sm:$0xff]
  %v33 = vld [vmem:[%s0 + $0x98] sm:$0xff]
  %v34 = vld [vmem:[%s0 + $0xa0] sm:$0xff]
  %v35 = vld [vmem:[%s0 + $0xa8] sm:$0xff]
  %v36 = vld [vmem:[%s0 + $0xb0] sm:$0xff]
  %v37 = vld [vmem:[%s0 + $0xb8] sm:$0xff]
  %v38 = vld [vmem:[%s0 + $0xc0] sm:$0xff]
  %v39 = vld [vmem:[%s0 + $0xc8] sm:$0xff]
  %v40 = vld [vmem:[%s0 + $0xd0] sm:$0xff]
  %v41 = vld [vmem:[%s0 + $0xd8] sm:$0xff]
  %v42 = vld [vmem:[%s0 + $0xe0] sm:$0xff]
  %v43 = vld [vmem:[%s0 + $0xe8] sm:$0xff]
  %v44 = vld [vmem:[%s0 + $0xf0] sm:$0xff]
  %v45 = vld [vmem:[%s0 + $0xf8] sm:$0xff]
  %v46 = vld [vmem:[%s0 + $0x100] sm:$0xff]
  %v47 = vld [vmem:[%s0 + $0x108] sm:$0xff]
  %v48 = vld [vmem:[%s0 + $0x110] sm:$0xff]
  %v49 = vld [vmem:[%s0 + $0x118] sm:$0xff]
  %v50 = vld [vmem:[%s0 + $0x120] sm:$0xff]
  %v51 = vld [vmem:[%s0 + $0x128] sm:$0xff]
  %v52 = vld [vmem:[%s0 + $0x130] sm:$0xff]
  %v53 = vld [vmem:[%s0 + $0x138] sm:$0xff]
  %v54 = vld [vmem:[%s0 + $0x140] sm:$0xff]
  %v55 = vld [vmem:[%s0 + $0x148] sm:$0xff]
  %v56 = vld [vmem:[%s0 + $0x150] sm:$0xff]
  %v57 = vld [vmem:[%s0 + $0x158] sm:$0xff]
  %v58 = vld [vmem:[%s0 + $0x160] sm:$0xff]
  %v59 = vld [vmem:[%s0 + $0x168] sm:$0xff]
  %v60 = vld [vmem:[%s0 + $0x170] sm:$0xff]
  %v61 = vld [vmem:[%s0 + $0x178] sm:$0xff]
  %v62 = vld [vmem:[%s0 + $0x180] sm:$0xff]
  %v63 = vld [vmem:[%s0 + $0x188] sm:$0xff]
  %v64 = vld [vmem:[%s0 + $0x190] sm:$0xff]
  %v65 = vld [vmem:[%s0 + $0x198] sm:$0xff]
  %v66 = vld [vmem:[%s0 + $0x1a0] sm:$0xff]
  %v67 = vld [vmem:[%s0 + $0x1a8] sm:$0xff]
  %v68 = vld [vmem:[%s0 + $0x1b0] sm:$0xff]
  %v69 = vld [vmem:[%s0 + $0x1b8] sm:$0xff]
  %v70 = vld [vmem:[%s0 + $0x1c0] sm:$0xff]
  %v71 = vld [vmem:[%s0 + $0x1c8] sm:$0xff]
  %v72 = vld [vmem:[%s0 + $0x1d0] sm:$0xff]
  %v73 = vld [vmem:[%s0 + $0x1d8] sm:$0xff]
  %v74 = vld [vmem:[%s0 + $0x1e0] sm:$0xff]
  %v75 = vld [vmem:[%s0 + $0x1e8] sm:$0xff]
  %v76 = vld [vmem:[%s0 + $0x1f0] sm:$0xff]
  %v77 = vld [vmem:[%s0 + $0x1f8] sm:$0xff]
  %vm78 = vcmask 261120
  %v79 = vsel %vm78, %v14, 0.0
  %80 = vadd.xlane.f32.xlu0 %v79
  %v81 = vpop.xlane.xlu0 %80
  %v82 = vsel %vm78, %v15, 0.0
  %83 = vadd.xlane.f32.xlu0 %v82
  %v84 = vpop.xlane.xlu0 %83
  %v85 = vsel %vm78, %v16, 0.0
  %86 = vadd.xlane.f32.xlu0 %v85
  %v87 = vpop.xlane.xlu0 %86
  %v88 = vsel %vm78, %v17, 0.0
  %89 = vadd.xlane.f32.xlu0 %v88
  %v90 = vpop.xlane.xlu0 %89
  %v91 = vsel %vm78, %v18, 0.0
  %92 = vadd.xlane.f32.xlu0 %v91
  %v93 = vpop.xlane.xlu0 %92
  %v94 = vsel %vm78, %v19, 0.0
  %95 = vadd.xlane.f32.xlu0 %v94
  %v96 = vpop.xlane.xlu0 %95
  %v97 = vsel %vm78, %v20, 0.0
  %98 = vadd.xlane.f32.xlu0 %v97
  %v99 = vpop.xlane.xlu0 %98
  %v100 = vsel %vm78, %v21, 0.0
  %101 = vadd.xlane.f32.xlu0 %v100
  %v102 = vpop.xlane.xlu0 %101
  %v103 = vsel %vm78, %v22, 0.0
  %104 = vadd.xlane.f32.xlu0 %v103
  %v105 = vpop.xlane.xlu0 %104
  %v106 = vsel %vm78, %v23, 0.0
  %107 = vadd.xlane.f32.xlu0 %v106
  %v108 = vpop.xlane.xlu0 %107
  %v109 = vsel %vm78, %v24, 0.0
  %110 = vadd.xlane.f32.xlu0 %v109
  %v111 = vpop.xlane.xlu0 %110
  %v112 = vsel %vm78, %v25, 0.0
  %113 = vadd.xlane.f32.xlu0 %v112
  %v114 = vpop.xlane.xlu0 %113
  %v115 = vsel %vm78, %v26, 0.0
  %116 = vadd.xlane.f32.xlu0 %v115
  %v117 = vpop.xlane.xlu0 %116
  %v118 = vsel %vm78, %v27, 0.0
  %119 = vadd.xlane.f32.xlu0 %v118
  %v120 = vpop.xlane.xlu0 %119
  %v121 = vsel %vm78, %v28, 0.0
  %122 = vadd.xlane.f32.xlu0 %v121
  %v123 = vpop.xlane.xlu0 %122
  %v124 = vsel %vm78, %v29, 0.0
  %125 = vadd.xlane.f32.xlu0 %v124
  %v126 = vpop.xlane.xlu0 %125
  %v127 = vsel %vm78, %v30, 0.0
  %128 = vadd.xlane.f32.xlu0 %v127
  %v129 = vpop.xlane.xlu0 %128
  %v130 = vsel %vm78, %v31, 0.0
  %131 = vadd.xlane.f32.xlu0 %v130
  %v132 = vpop.xlane.xlu0 %131
  %v133 = vsel %vm78, %v32, 0.0
  %134 = vadd.xlane.f32.xlu0 %v133
  %v135 = vpop.xlane.xlu0 %134
  %v136 = vsel %vm78, %v33, 0.0
  %137 = vadd.xlane.f32.xlu0 %v136
  %v138 = vpop.xlane.xlu0 %137
  %v139 = vsel %vm78, %v34, 0.0
  %140 = vadd.xlane.f32.xlu0 %v139
  %v141 = vpop.xlane.xlu0 %140
  %v142 = vsel %vm78, %v35, 0.0
  %143 = vadd.xlane.f32.xlu0 %v142
  %v144 = vpop.xlane.xlu0 %143
  %v145 = vsel %vm78, %v36, 0.0
  %146 = vadd.xlane.f32.xlu0 %v145
  %v147 = vpop.xlane.xlu0 %146
  %v148 = vsel %vm78, %v37, 0.0
  %149 = vadd.xlane.f32.xlu0 %v148
  %v150 = vpop.xlane.xlu0 %149
  %v151 = vsel %vm78, %v38, 0.0
  %152 = vadd.xlane.f32.xlu0 %v151
  %v153 = vpop.xlane.xlu0 %152
  %v154 = vsel %vm78, %v39, 0.0
  %155 = vadd.xlane.f32.xlu0 %v154
  %v156 = vpop.xlane.xlu0 %155
  %v157 = vsel %vm78, %v40, 0.0
  %158 = vadd.xlane.f32.xlu0 %v157
  %v159 = vpop.xlane.xlu0 %158
  %v160 = vsel %vm78, %v41, 0.0
  %161 = vadd.xlane.f32.xlu0 %v160
  %v162 = vpop.xlane.xlu0 %161
  %v163 = vsel %vm78, %v42, 0.0
  %164 = vadd.xlane.f32.xlu0 %v163
  %v165 = vpop.xlane.xlu0 %164
  %v166 = vsel %vm78, %v43, 0.0
  %167 = vadd.xlane.f32.xlu0 %v166
  %v168 = vpop.xlane.xlu0 %167
  %v169 = vsel %vm78, %v44, 0.0
  %170 = vadd.xlane.f32.xlu0 %v169
  %v171 = vpop.xlane.xlu0 %170
  %v172 = vsel %vm78, %v45, 0.0
  %173 = vadd.xlane.f32.xlu0 %v172
  %v174 = vpop.xlane.xlu0 %173
  %v175 = vsel %vm78, %v46, 0.0
  %176 = vadd.xlane.f32.xlu0 %v175
  %v177 = vpop.xlane.xlu0 %176
  %v178 = vsel %vm78, %v47, 0.0
  %179 = vadd.xlane.f32.xlu0 %v178
  %v180 = vpop.xlane.xlu0 %179
  %v181 = vsel %vm78, %v48, 0.0
  %182 = vadd.xlane.f32.xlu0 %v181
  %v183 = vpop.xlane.xlu0 %182
  %v184 = vsel %vm78, %v49, 0.0
  %185 = vadd.xlane.f32.xlu0 %v184
  %v186 = vpop.xlane.xlu0 %185
  %v187 = vsel %vm78, %v50, 0.0
  %188 = vadd.xlane.f32.xlu0 %v187
  %v189 = vpop.xlane.xlu0 %188
  %v190 = vsel %vm78, %v51, 0.0
  %191 = vadd.xlane.f32.xlu0 %v190
  %v192 = vpop.xlane.xlu0 %191
  %v193 = vsel %vm78, %v52, 0.0
  %194 = vadd.xlane.f32.xlu0 %v193
  %v195 = vpop.xlane.xlu0 %194
  %v196 = vsel %vm78, %v53, 0.0
  %197 = vadd.xlane.f32.xlu0 %v196
  %v198 = vpop.xlane.xlu0 %197
  %v199 = vsel %vm78, %v54, 0.0
  %200 = vadd.xlane.f32.xlu0 %v199
  %v201 = vpop.xlane.xlu0 %200
  %v202 = vsel %vm78, %v55, 0.0
  %203 = vadd.xlane.f32.xlu0 %v202
  %v204 = vpop.xlane.xlu0 %203
  %v205 = vsel %vm78, %v56, 0.0
  %206 = vadd.xlane.f32.xlu0 %v205
  %v207 = vpop.xlane.xlu0 %206
  %v208 = vsel %vm78, %v57, 0.0
  %209 = vadd.xlane.f32.xlu0 %v208
  %v210 = vpop.xlane.xlu0 %209
  %v211 = vsel %vm78, %v58, 0.0
  %212 = vadd.xlane.f32.xlu0 %v211
  %v213 = vpop.xlane.xlu0 %212
  %v214 = vsel %vm78, %v59, 0.0
  %215 = vadd.xlane.f32.xlu0 %v214
  %v216 = vpop.xlane.xlu0 %215
  %v217 = vsel %vm78, %v60, 0.0
  %218 = vadd.xlane.f32.xlu0 %v217
  %v219 = vpop.xlane.xlu0 %218
  %v220 = vsel %vm78, %v61, 0.0
  %221 = vadd.xlane.f32.xlu0 %v220
  %v222 = vpop.xlane.xlu0 %221
  %v223 = vsel %vm78, %v62, 0.0
  %224 = vadd.xlane.f32.xlu0 %v223
  %v225 = vpop.xlane.xlu0 %224
  %v226 = vsel %vm78, %v63, 0.0
  %227 = vadd.xlane.f32.xlu0 %v226
  %v228 = vpop.xlane.xlu0 %227
  %v229 = vsel %vm78, %v64, 0.0
  %230 = vadd.xlane.f32.xlu0 %v229
  %v231 = vpop.xlane.xlu0 %230
  %v232 = vsel %vm78, %v65, 0.0
  %233 = vadd.xlane.f32.xlu0 %v232
  %v234 = vpop.xlane.xlu0 %233
  %v235 = vsel %vm78, %v66, 0.0
  %236 = vadd.xlane.f32.xlu0 %v235
  %v237 = vpop.xlane.xlu0 %236
  %v238 = vsel %vm78, %v67, 0.0
  %239 = vadd.xlane.f32.xlu0 %v238
  %v240 = vpop.xlane.xlu0 %239
  %v241 = vsel %vm78, %v68, 0.0
  %242 = vadd.xlane.f32.xlu0 %v241
  %v243 = vpop.xlane.xlu0 %242
  %v244 = vsel %vm78, %v69, 0.0
  %245 = vadd.xlane.f32.xlu0 %v244
  %v246 = vpop.xlane.xlu0 %245
  %v247 = vsel %vm78, %v70, 0.0
  %248 = vadd.xlane.f32.xlu0 %v247
  %v249 = vpop.xlane.xlu0 %248
  %v250 = vsel %vm78, %v71, 0.0
  %251 = vadd.xlane.f32.xlu0 %v250
  %v252 = vpop.xlane.xlu0 %251
  %v253 = vsel %vm78, %v72, 0.0
  %254 = vadd.xlane.f32.xlu0 %v253
  %v255 = vpop.xlane.xlu0 %254
  %v256 = vsel %vm78, %v73, 0.0
  %257 = vadd.xlane.f32.xlu0 %v256
  %v258 = vpop.xlane.xlu0 %257
  %v259 = vsel %vm78, %v74, 0.0
  %260 = vadd.xlane.f32.xlu0 %v259
  %v261 = vpop.xlane.xlu0 %260
  %v262 = vsel %vm78, %v75, 0.0
  %263 = vadd.xlane.f32.xlu0 %v262
  %v264 = vpop.xlane.xlu0 %263
  %v265 = vsel %vm78, %v76, 0.0
  %266 = vadd.xlane.f32.xlu0 %v265
  %v267 = vpop.xlane.xlu0 %266
  %v268 = vsel %vm78, %v77, 0.0
  %269 = vadd.xlane.f32.xlu0 %v268
  %v270 = vpop.xlane.xlu0 %269
  %v271 = vrcp.pop 32.0
  %v272 = vmul.f32 32.0, %v271
  %v273 = vsub.f32 1.0, %v272
  %v274 = vmul.f32 %v271, %v273
  %v275 = vadd.f32 %v271, %v274
  %vm276 = vweird.f32 %v271
  %v277 = vsel %vm276, %v271, %v275
  %v278 = vmul.f32 %v81, %v277
  %v279 = vmul.f32 %v84, %v277
  %v280 = vmul.f32 %v87, %v277
  %v281 = vmul.f32 %v90, %v277
  %v282 = vmul.f32 %v93, %v277
  %v283 = vmul.f32 %v96, %v277
  %v284 = vmul.f32 %v99, %v277
  %v285 = vmul.f32 %v102, %v277
  %v286 = vmul.f32 %v105, %v277
  %v287 = vmul.f32 %v108, %v277
  %v288 = vmul.f32 %v111, %v277
  %v289 = vmul.f32 %v114, %v277
  %v290 = vmul.f32 %v117, %v277
  %v291 = vmul.f32 %v120, %v277
  %v292 = vmul.f32 %v123, %v277
  %v293 = vmul.f32 %v126, %v277
  %v294 = vmul.f32 %v129, %v277
  %v295 = vmul.f32 %v132, %v277
  %v296 = vmul.f32 %v135, %v277
  %v297 = vmul.f32 %v138, %v277
  %v298 = vmul.f32 %v141, %v277
  %v299 = vmul.f32 %v144, %v277
  %v300 = vmul.f32 %v147, %v277
  %v301 = vmul.f32 %v150, %v277
  %v302 = vmul.f32 %v153, %v277
  %v303 = vmul.f32 %v156, %v277
  %v304 = vmul.f32 %v159, %v277
  %v305 = vmul.f32 %v162, %v277
  %v306 = vmul.f32 %v165, %v277
  %v307 = vmul.f32 %v168, %v277
  %v308 = vmul.f32 %v171, %v277
  %v309 = vmul.f32 %v174, %v277
  %v310 = vmul.f32 %v177, %v277
  %v311 = vmul.f32 %v180, %v277
  %v312 = vmul.f32 %v183, %v277
  %v313 = vmul.f32 %v186, %v277
  %v314 = vmul.f32 %v189, %v277
  %v315 = vmul.f32 %v192, %v277
  %v316 = vmul.f32 %v195, %v277
  %v317 = vmul.f32 %v198, %v277
  %v318 = vmul.f32 %v201, %v277
  %v319 = vmul.f32 %v204, %v277
  %v320 = vmul.f32 %v207, %v277
  %v321 = vmul.f32 %v210, %v277
  %v322 = vmul.f32 %v213, %v277
  %v323 = vmul.f32 %v216, %v277
  %v324 = vmul.f32 %v219, %v277
  %v325 = vmul.f32 %v222, %v277
  %v326 = vmul.f32 %v225, %v277
  %v327 = vmul.f32 %v228, %v277
  %v328 = vmul.f32 %v231, %v277
  %v329 = vmul.f32 %v234, %v277
  %v330 = vmul.f32 %v237, %v277
  %v331 = vmul.f32 %v240, %v277
  %v332 = vmul.f32 %v243, %v277
  %v333 = vmul.f32 %v246, %v277
  %v334 = vmul.f32 %v249, %v277
  %v335 = vmul.f32 %v252, %v277
  %v336 = vmul.f32 %v255, %v277
  %v337 = vmul.f32 %v258, %v277
  %v338 = vmul.f32 %v261, %v277
  %v339 = vmul.f32 %v264, %v277
  %v340 = vmul.f32 %v267, %v277
  %v341 = vmul.f32 %v270, %v277
  %v342 = vsub.f32 %v14, %v278
  %v343 = vsub.f32 %v15, %v279
  %v344 = vsub.f32 %v16, %v280
  %v345 = vsub.f32 %v17, %v281
  %v346 = vsub.f32 %v18, %v282
  %v347 = vsub.f32 %v19, %v283
  %v348 = vsub.f32 %v20, %v284
  %v349 = vsub.f32 %v21, %v285
  %v350 = vsub.f32 %v22, %v286
  %v351 = vsub.f32 %v23, %v287
  %v352 = vsub.f32 %v24, %v288
  %v353 = vsub.f32 %v25, %v289
  %v354 = vsub.f32 %v26, %v290
  %v355 = vsub.f32 %v27, %v291
  %v356 = vsub.f32 %v28, %v292
  %v357 = vsub.f32 %v29, %v293
  %v358 = vsub.f32 %v30, %v294
  %v359 = vsub.f32 %v31, %v295
  %v360 = vsub.f32 %v32, %v296
  %v361 = vsub.f32 %v33, %v297
  %v362 = vsub.f32 %v34, %v298
  %v363 = vsub.f32 %v35, %v299
  %v364 = vsub.f32 %v36, %v300
  %v365 = vsub.f32 %v37, %v301
  %v366 = vsub.f32 %v38, %v302
  %v367 = vsub.f32 %v39, %v303
  %v368 = vsub.f32 %v40, %v304
  %v369 = vsub.f32 %v41, %v305
  %v370 = vsub.f32 %v42, %v306
  %v371 = vsub.f32 %v43, %v307
  %v372 = vsub.f32 %v44, %v308
  %v373 = vsub.f32 %v45, %v309
  %v374 = vsub.f32 %v46, %v310
  %v375 = vsub.f32 %v47, %v311
  %v376 = vsub.f32 %v48, %v312
  %v377 = vsub.f32 %v49, %v313
  %v378 = vsub.f32 %v50, %v314
  %v379 = vsub.f32 %v51, %v315
  %v380 = vsub.f32 %v52, %v316
  %v381 = vsub.f32 %v53, %v317
  %v382 = vsub.f32 %v54, %v318
  %v383 = vsub.f32 %v55, %v319
  %v384 = vsub.f32 %v56, %v320
  %v385 = vsub.f32 %v57, %v321
  %v386 = vsub.f32 %v58, %v322
  %v387 = vsub.f32 %v59, %v323
  %v388 = vsub.f32 %v60, %v324
  %v389 = vsub.f32 %v61, %v325
  %v390 = vsub.f32 %v62, %v326
  %v391 = vsub.f32 %v63, %v327
  %v392 = vsub.f32 %v64, %v328
  %v393 = vsub.f32 %v65, %v329
  %v394 = vsub.f32 %v66, %v330
  %v395 = vsub.f32 %v67, %v331
  %v396 = vsub.f32 %v68, %v332
  %v397 = vsub.f32 %v69, %v333
  %v398 = vsub.f32 %v70, %v334
  %v399 = vsub.f32 %v71, %v335
  %v400 = vsub.f32 %v72, %v336
  %v401 = vsub.f32 %v73, %v337
  %v402 = vsub.f32 %v74, %v338
  %v403 = vsub.f32 %v75, %v339
  %v404 = vsub.f32 %v76, %v340
  %v405 = vsub.f32 %v77, %v341
  %v406 = vmul.f32 %v342, %v342
  %v407 = vmul.f32 %v343, %v343
  %v408 = vmul.f32 %v344, %v344
  %v409 = vmul.f32 %v345, %v345
  %v410 = vmul.f32 %v346, %v346
  %v411 = vmul.f32 %v347, %v347
  %v412 = vmul.f32 %v348, %v348
  %v413 = vmul.f32 %v349, %v349
  %v414 = vmul.f32 %v350, %v350
  %v415 = vmul.f32 %v351, %v351
  %v416 = vmul.f32 %v352, %v352
  %v417 = vmul.f32 %v353, %v353
  %v418 = vmul.f32 %v354, %v354
  %v419 = vmul.f32 %v355, %v355
  %v420 = vmul.f32 %v356, %v356
  %v421 = vmul.f32 %v357, %v357
  %v422 = vmul.f32 %v358, %v358
  %v423 = vmul.f32 %v359, %v359
  %v424 = vmul.f32 %v360, %v360
  %v425 = vmul.f32 %v361, %v361
  %v426 = vmul.f32 %v362, %v362
  %v427 = vmul.f32 %v363, %v363
  %v428 = vmul.f32 %v364, %v364
  %v429 = vmul.f32 %v365, %v365
  %v430 = vmul.f32 %v366, %v366
  %v431 = vmul.f32 %v367, %v367
  %v432 = vmul.f32 %v368, %v368
  %v433 = vmul.f32 %v369, %v369
  %v434 = vmul.f32 %v370, %v370
  %v435 = vmul.f32 %v371, %v371
  %v436 = vmul.f32 %v372, %v372
  %v437 = vmul.f32 %v373, %v373
  %v438 = vmul.f32 %v374, %v374
  %v439 = vmul.f32 %v375, %v375
  %v440 = vmul.f32 %v376, %v376
  %v441 = vmul.f32 %v377, %v377
  %v442 = vmul.f32 %v378, %v378
  %v443 = vmul.f32 %v379, %v379
  %v444 = vmul.f32 %v380, %v380
  %v445 = vmul.f32 %v381, %v381
  %v446 = vmul.f32 %v382, %v382
  %v447 = vmul.f32 %v383, %v383
  %v448 = vmul.f32 %v384, %v384
  %v449 = vmul.f32 %v385, %v385
  %v450 = vmul.f32 %v386, %v386
  %v451 = vmul.f32 %v387, %v387
  %v452 = vmul.f32 %v388, %v388
  %v453 = vmul.f32 %v389, %v389
  %v454 = vmul.f32 %v390, %v390
  %v455 = vmul.f32 %v391, %v391
  %v456 = vmul.f32 %v392, %v392
  %v457 = vmul.f32 %v393, %v393
  %v458 = vmul.f32 %v394, %v394
  %v459 = vmul.f32 %v395, %v395
  %v460 = vmul.f32 %v396, %v396
  %v461 = vmul.f32 %v397, %v397
  %v462 = vmul.f32 %v398, %v398
  %v463 = vmul.f32 %v399, %v399
  %v464 = vmul.f32 %v400, %v400
  %v465 = vmul.f32 %v401, %v401
  %v466 = vmul.f32 %v402, %v402
  %v467 = vmul.f32 %v403, %v403
  %v468 = vmul.f32 %v404, %v404
  %v469 = vmul.f32 %v405, %v405
  %v470 = vsel %vm78, %v406, 0.0
  %471 = vadd.xlane.f32.xlu0 %v470
  %v472 = vpop.xlane.xlu0 %471
  %v473 = vsel %vm78, %v407, 0.0
  %474 = vadd.xlane.f32.xlu0 %v473
  %v475 = vpop.xlane.xlu0 %474
  %v476 = vsel %vm78, %v408, 0.0
  %477 = vadd.xlane.f32.xlu0 %v476
  %v478 = vpop.xlane.xlu0 %477
  %v479 = vsel %vm78, %v409, 0.0
  %480 = vadd.xlane.f32.xlu0 %v479
  %v481 = vpop.xlane.xlu0 %480
  %v482 = vsel %vm78, %v410, 0.0
  %483 = vadd.xlane.f32.xlu0 %v482
  %v484 = vpop.xlane.xlu0 %483
  %v485 = vsel %vm78, %v411, 0.0
  %486 = vadd.xlane.f32.xlu0 %v485
  %v487 = vpop.xlane.xlu0 %486
  %v488 = vsel %vm78, %v412, 0.0
  %489 = vadd.xlane.f32.xlu0 %v488
  %v490 = vpop.xlane.xlu0 %489
  %v491 = vsel %vm78, %v413, 0.0
  %492 = vadd.xlane.f32.xlu0 %v491
  %v493 = vpop.xlane.xlu0 %492
  %v494 = vsel %vm78, %v414, 0.0
  %495 = vadd.xlane.f32.xlu0 %v494
  %v496 = vpop.xlane.xlu0 %495
  %v497 = vsel %vm78, %v415, 0.0
  %498 = vadd.xlane.f32.xlu0 %v497
  %v499 = vpop.xlane.xlu0 %498
  %v500 = vsel %vm78, %v416, 0.0
  %501 = vadd.xlane.f32.xlu0 %v500
  %v502 = vpop.xlane.xlu0 %501
  %v503 = vsel %vm78, %v417, 0.0
  %504 = vadd.xlane.f32.xlu0 %v503
  %v505 = vpop.xlane.xlu0 %504
  %v506 = vsel %vm78, %v418, 0.0
  %507 = vadd.xlane.f32.xlu0 %v506
  %v508 = vpop.xlane.xlu0 %507
  %v509 = vsel %vm78, %v419, 0.0
  %510 = vadd.xlane.f32.xlu0 %v509
  %v511 = vpop.xlane.xlu0 %510
  %v512 = vsel %vm78, %v420, 0.0
  %513 = vadd.xlane.f32.xlu0 %v512
  %v514 = vpop.xlane.xlu0 %513
  %v515 = vsel %vm78, %v421, 0.0
  %516 = vadd.xlane.f32.xlu0 %v515
  %v517 = vpop.xlane.xlu0 %516
  %v518 = vsel %vm78, %v422, 0.0
  %519 = vadd.xlane.f32.xlu0 %v518
  %v520 = vpop.xlane.xlu0 %519
  %v521 = vsel %vm78, %v423, 0.0
  %522 = vadd.xlane.f32.xlu0 %v521
  %v523 = vpop.xlane.xlu0 %522
  %v524 = vsel %vm78, %v424, 0.0
  %525 = vadd.xlane.f32.xlu0 %v524
  %v526 = vpop.xlane.xlu0 %525
  %v527 = vsel %vm78, %v425, 0.0
  %528 = vadd.xlane.f32.xlu0 %v527
  %v529 = vpop.xlane.xlu0 %528
  %v530 = vsel %vm78, %v426, 0.0
  %531 = vadd.xlane.f32.xlu0 %v530
  %v532 = vpop.xlane.xlu0 %531
  %v533 = vsel %vm78, %v427, 0.0
  %534 = vadd.xlane.f32.xlu0 %v533
  %v535 = vpop.xlane.xlu0 %534
  %v536 = vsel %vm78, %v428, 0.0
  %537 = vadd.xlane.f32.xlu0 %v536
  %v538 = vpop.xlane.xlu0 %537
  %v539 = vsel %vm78, %v429, 0.0
  %540 = vadd.xlane.f32.xlu0 %v539
  %v541 = vpop.xlane.xlu0 %540
  %v542 = vsel %vm78, %v430, 0.0
  %543 = vadd.xlane.f32.xlu0 %v542
  %v544 = vpop.xlane.xlu0 %543
  %v545 = vsel %vm78, %v431, 0.0
  %546 = vadd.xlane.f32.xlu0 %v545
  %v547 = vpop.xlane.xlu0 %546
  %v548 = vsel %vm78, %v432, 0.0
  %549 = vadd.xlane.f32.xlu0 %v548
  %v550 = vpop.xlane.xlu0 %549
  %v551 = vsel %vm78, %v433, 0.0
  %552 = vadd.xlane.f32.xlu0 %v551
  %v553 = vpop.xlane.xlu0 %552
  %v554 = vsel %vm78, %v434, 0.0
  %555 = vadd.xlane.f32.xlu0 %v554
  %v556 = vpop.xlane.xlu0 %555
  %v557 = vsel %vm78, %v435, 0.0
  %558 = vadd.xlane.f32.xlu0 %v557
  %v559 = vpop.xlane.xlu0 %558
  %v560 = vsel %vm78, %v436, 0.0
  %561 = vadd.xlane.f32.xlu0 %v560
  %v562 = vpop.xlane.xlu0 %561
  %v563 = vsel %vm78, %v437, 0.0
  %564 = vadd.xlane.f32.xlu0 %v563
  %v565 = vpop.xlane.xlu0 %564
  %v566 = vsel %vm78, %v438, 0.0
  %567 = vadd.xlane.f32.xlu0 %v566
  %v568 = vpop.xlane.xlu0 %567
  %v569 = vsel %vm78, %v439, 0.0
  %570 = vadd.xlane.f32.xlu0 %v569
  %v571 = vpop.xlane.xlu0 %570
  %v572 = vsel %vm78, %v440, 0.0
  %573 = vadd.xlane.f32.xlu0 %v572
  %v574 = vpop.xlane.xlu0 %573
  %v575 = vsel %vm78, %v441, 0.0
  %576 = vadd.xlane.f32.xlu0 %v575
  %v577 = vpop.xlane.xlu0 %576
  %v578 = vsel %vm78, %v442, 0.0
  %579 = vadd.xlane.f32.xlu0 %v578
  %v580 = vpop.xlane.xlu0 %579
  %v581 = vsel %vm78, %v443, 0.0
  %582 = vadd.xlane.f32.xlu0 %v581
  %v583 = vpop.xlane.xlu0 %582
  %v584 = vsel %vm78, %v444, 0.0
  %585 = vadd.xlane.f32.xlu0 %v584
  %v586 = vpop.xlane.xlu0 %585
  %v587 = vsel %vm78, %v445, 0.0
  %588 = vadd.xlane.f32.xlu0 %v587
  %v589 = vpop.xlane.xlu0 %588
  %v590 = vsel %vm78, %v446, 0.0
  %591 = vadd.xlane.f32.xlu0 %v590
  %v592 = vpop.xlane.xlu0 %591
  %v593 = vsel %vm78, %v447, 0.0
  %594 = vadd.xlane.f32.xlu0 %v593
  %v595 = vpop.xlane.xlu0 %594
  %v596 = vsel %vm78, %v448, 0.0
  %597 = vadd.xlane.f32.xlu0 %v596
  %v598 = vpop.xlane.xlu0 %597
  %v599 = vsel %vm78, %v449, 0.0
  %600 = vadd.xlane.f32.xlu0 %v599
  %v601 = vpop.xlane.xlu0 %600
  %v602 = vsel %vm78, %v450, 0.0
  %603 = vadd.xlane.f32.xlu0 %v602
  %v604 = vpop.xlane.xlu0 %603
  %v605 = vsel %vm78, %v451, 0.0
  %606 = vadd.xlane.f32.xlu0 %v605
  %v607 = vpop.xlane.xlu0 %606
  %v608 = vsel %vm78, %v452, 0.0
  %609 = vadd.xlane.f32.xlu0 %v608
  %v610 = vpop.xlane.xlu0 %609
  %v611 = vsel %vm78, %v453, 0.0
  %612 = vadd.xlane.f32.xlu0 %v611
  %v613 = vpop.xlane.xlu0 %612
  %v614 = vsel %vm78, %v454, 0.0
  %615 = vadd.xlane.f32.xlu0 %v614
  %v616 = vpop.xlane.xlu0 %615
  %v617 = vsel %vm78, %v455, 0.0
  %618 = vadd.xlane.f32.xlu0 %v617
  %v619 = vpop.xlane.xlu0 %618
  %v620 = vsel %vm78, %v456, 0.0
  %621 = vadd.xlane.f32.xlu0 %v620
  %v622 = vpop.xlane.xlu0 %621
  %v623 = vsel %vm78, %v457, 0.0
  %624 = vadd.xlane.f32.xlu0 %v623
  %v625 = vpop.xlane.xlu0 %624
  %v626 = vsel %vm78, %v458, 0.0
  %627 = vadd.xlane.f32.xlu0 %v626
  %v628 = vpop.xlane.xlu0 %627
  %v629 = vsel %vm78, %v459, 0.0
  %630 = vadd.xlane.f32.xlu0 %v629
  %v631 = vpop.xlane.xlu0 %630
  %v632 = vsel %vm78, %v460, 0.0
  %633 = vadd.xlane.f32.xlu0 %v632
  %v634 = vpop.xlane.xlu0 %633
  %v635 = vsel %vm78, %v461, 0.0
  %636 = vadd.xlane.f32.xlu0 %v635
  %v637 = vpop.xlane.xlu0 %636
  %v638 = vsel %vm78, %v462, 0.0
  %639 = vadd.xlane.f32.xlu0 %v638
  %v640 = vpop.xlane.xlu0 %639
  %v641 = vsel %vm78, %v463, 0.0
  %642 = vadd.xlane.f32.xlu0 %v641
  %v643 = vpop.xlane.xlu0 %642
  %v644 = vsel %vm78, %v464, 0.0
  %645 = vadd.xlane.f32.xlu0 %v644
  %v646 = vpop.xlane.xlu0 %645
  %v647 = vsel %vm78, %v465, 0.0
  %648 = vadd.xlane.f32.xlu0 %v647
  %v649 = vpop.xlane.xlu0 %648
  %v650 = vsel %vm78, %v466, 0.0
  %651 = vadd.xlane.f32.xlu0 %v650
  %v652 = vpop.xlane.xlu0 %651
  %v653 = vsel %vm78, %v467, 0.0
  %654 = vadd.xlane.f32.xlu0 %v653
  %v655 = vpop.xlane.xlu0 %654
  %v656 = vsel %vm78, %v468, 0.0
  %657 = vadd.xlane.f32.xlu0 %v656
  %v658 = vpop.xlane.xlu0 %657
  %v659 = vsel %vm78, %v469, 0.0
  %660 = vadd.xlane.f32.xlu0 %v659
  %v661 = vpop.xlane.xlu0 %660
  %v662 = vmul.f32 %v472, %v277
  %v663 = vmul.f32 %v475, %v277
  %v664 = vmul.f32 %v478, %v277
  %v665 = vmul.f32 %v481, %v277
  %v666 = vmul.f32 %v484, %v277
  %v667 = vmul.f32 %v487, %v277
  %v668 = vmul.f32 %v490, %v277
  %v669 = vmul.f32 %v493, %v277
  %v670 = vmul.f32 %v496, %v277
  %v671 = vmul.f32 %v499, %v277
  %v672 = vmul.f32 %v502, %v277
  %v673 = vmul.f32 %v505, %v277
  %v674 = vmul.f32 %v508, %v277
  %v675 = vmul.f32 %v511, %v277
  %v676 = vmul.f32 %v514, %v277
  %v677 = vmul.f32 %v517, %v277
  %v678 = vmul.f32 %v520, %v277
  %v679 = vmul.f32 %v523, %v277
  %v680 = vmul.f32 %v526, %v277
  %v681 = vmul.f32 %v529, %v277
  %v682 = vmul.f32 %v532, %v277
  %v683 = vmul.f32 %v535, %v277
  %v684 = vmul.f32 %v538, %v277
  %v685 = vmul.f32 %v541, %v277
  %v686 = vmul.f32 %v544, %v277
  %v687 = vmul.f32 %v547, %v277
  %v688 = vmul.f32 %v550, %v277
  %v689 = vmul.f32 %v553, %v277
  %v690 = vmul.f32 %v556, %v277
  %v691 = vmul.f32 %v559, %v277
  %v692 = vmul.f32 %v562, %v277
  %v693 = vmul.f32 %v565, %v277
  %v694 = vmul.f32 %v568, %v277
  %v695 = vmul.f32 %v571, %v277
  %v696 = vmul.f32 %v574, %v277
  %v697 = vmul.f32 %v577, %v277
  %v698 = vmul.f32 %v580, %v277
  %v699 = vmul.f32 %v583, %v277
  %v700 = vmul.f32 %v586, %v277
  %v701 = vmul.f32 %v589, %v277
  %v702 = vmul.f32 %v592, %v277
  %v703 = vmul.f32 %v595, %v277
  %v704 = vmul.f32 %v598, %v277
  %v705 = vmul.f32 %v601, %v277
  %v706 = vmul.f32 %v604, %v277
  %v707 = vmul.f32 %v607, %v277
  %v708 = vmul.f32 %v610, %v277
  %v709 = vmul.f32 %v613, %v277
  %v710 = vmul.f32 %v616, %v277
  %v711 = vmul.f32 %v619, %v277
  %v712 = vmul.f32 %v622, %v277
  %v713 = vmul.f32 %v625, %v277
  %v714 = vmul.f32 %v628, %v277
  %v715 = vmul.f32 %v631, %v277
  %v716 = vmul.f32 %v634, %v277
  %v717 = vmul.f32 %v637, %v277
  %v718 = vmul.f32 %v640, %v277
  %v719 = vmul.f32 %v643, %v277
  %v720 = vmul.f32 %v646, %v277
  %v721 = vmul.f32 %v649, %v277
  %v722 = vmul.f32 %v652, %v277
  %v723 = vmul.f32 %v655, %v277
  %v724 = vmul.f32 %v658, %v277
  %v725 = vmul.f32 %v661, %v277
  %v726 = vadd.f32 %v662, 1e-06
  %v727 = vadd.f32 %v663, 1e-06
  %v728 = vadd.f32 %v664, 1e-06
  %v729 = vadd.f32 %v665, 1e-06
  %v730 = vadd.f32 %v666, 1e-06
  %v731 = vadd.f32 %v667, 1e-06
  %v732 = vadd.f32 %v668, 1e-06
  %v733 = vadd.f32 %v669, 1e-06
  %v734 = vadd.f32 %v670, 1e-06
  %v735 = vadd.f32 %v671, 1e-06
  %v736 = vadd.f32 %v672, 1e-06
  %v737 = vadd.f32 %v673, 1e-06
  %v738 = vadd.f32 %v674, 1e-06
  %v739 = vadd.f32 %v675, 1e-06
  %v740 = vadd.f32 %v676, 1e-06
  %v741 = vadd.f32 %v677, 1e-06
  %v742 = vadd.f32 %v678, 1e-06
  %v743 = vadd.f32 %v679, 1e-06
  %v744 = vadd.f32 %v680, 1e-06
  %v745 = vadd.f32 %v681, 1e-06
  %v746 = vadd.f32 %v682, 1e-06
  %v747 = vadd.f32 %v683, 1e-06
  %v748 = vadd.f32 %v684, 1e-06
  %v749 = vadd.f32 %v685, 1e-06
  %v750 = vadd.f32 %v686, 1e-06
  %v751 = vadd.f32 %v687, 1e-06
  %v752 = vadd.f32 %v688, 1e-06
  %v753 = vadd.f32 %v689, 1e-06
  %v754 = vadd.f32 %v690, 1e-06
  %v755 = vadd.f32 %v691, 1e-06
  %v756 = vadd.f32 %v692, 1e-06
  %v757 = vadd.f32 %v693, 1e-06
  %v758 = vadd.f32 %v694, 1e-06
  %v759 = vadd.f32 %v695, 1e-06
  %v760 = vadd.f32 %v696, 1e-06
  %v761 = vadd.f32 %v697, 1e-06
  %v762 = vadd.f32 %v698, 1e-06
  %v763 = vadd.f32 %v699, 1e-06
  %v764 = vadd.f32 %v700, 1e-06
  %v765 = vadd.f32 %v701, 1e-06
  %v766 = vadd.f32 %v702, 1e-06
  %v767 = vadd.f32 %v703, 1e-06
  %v768 = vadd.f32 %v704, 1e-06
  %v769 = vadd.f32 %v705, 1e-06
  %v770 = vadd.f32 %v706, 1e-06
  %v771 = vadd.f32 %v707, 1e-06
  %v772 = vadd.f32 %v708, 1e-06
  %v773 = vadd.f32 %v709, 1e-06
  %v774 = vadd.f32 %v710, 1e-06
  %v775 = vadd.f32 %v711, 1e-06
  %v776 = vadd.f32 %v712, 1e-06
  %v777 = vadd.f32 %v713, 1e-06
  %v778 = vadd.f32 %v714, 1e-06
  %v779 = vadd.f32 %v715, 1e-06
  %v780 = vadd.f32 %v716, 1e-06
  %v781 = vadd.f32 %v717, 1e-06
  %v782 = vadd.f32 %v718, 1e-06
  %v783 = vadd.f32 %v719, 1e-06
  %v784 = vadd.f32 %v720, 1e-06
  %v785 = vadd.f32 %v721, 1e-06
  %v786 = vadd.f32 %v722, 1e-06
  %v787 = vadd.f32 %v723, 1e-06
  %v788 = vadd.f32 %v724, 1e-06
  %v789 = vadd.f32 %v725, 1e-06
  %v790 = vrsqrt.pop %v726
  %v791 = vmul.f32 %v790, %v726
  %v792 = vmul.f32 %v791, %v790
  %v793 = vmul.f32 0.5, %v792
  %v794 = vsub.f32 1.5, %v793
  %v795 = vmul.f32 %v790, %v794
  %vm796 = vweird.f32 %v726
  %vm797 = vweird.f32 %v790
  %vm798 = vmor %vm796, %vm797
  %v799 = vsel %vm798, %v790, %v795
  %v800 = vrsqrt.pop %v727
  %v801 = vmul.f32 %v800, %v727
  %v802 = vmul.f32 %v801, %v800
  %v803 = vmul.f32 0.5, %v802
  %v804 = vsub.f32 1.5, %v803
  %v805 = vmul.f32 %v800, %v804
  %vm806 = vweird.f32 %v727
  %vm807 = vweird.f32 %v800
  %vm808 = vmor %vm806, %vm807
  %v809 = vsel %vm808, %v800, %v805
  %v810 = vrsqrt.pop %v728
  %v811 = vmul.f32 %v810, %v728
  %v812 = vmul.f32 %v811, %v810
  %v813 = vmul.f32 0.5, %v812
  %v814 = vsub.f32 1.5, %v813
  %v815 = vmul.f32 %v810, %v814
  %vm816 = vweird.f32 %v728
  %vm817 = vweird.f32 %v810
  %vm818 = vmor %vm816, %vm817
  %v819 = vsel %vm818, %v810, %v815
  %v820 = vrsqrt.pop %v729
  %v821 = vmul.f32 %v820, %v729
  %v822 = vmul.f32 %v821, %v820
  %v823 = vmul.f32 0.5, %v822
  %v824 = vsub.f32 1.5, %v823
  %v825 = vmul.f32 %v820, %v824
  %vm826 = vweird.f32 %v729
  %vm827 = vweird.f32 %v820
  %vm828 = vmor %vm826, %vm827
  %v829 = vsel %vm828, %v820, %v825
  %v830 = vrsqrt.pop %v730
  %v831 = vmul.f32 %v830, %v730
  %v832 = vmul.f32 %v831, %v830
  %v833 = vmul.f32 0.5, %v832
  %v834 = vsub.f32 1.5, %v833
  %v835 = vmul.f32 %v830, %v834
  %vm836 = vweird.f32 %v730
  %vm837 = vweird.f32 %v830
  %vm838 = vmor %vm836, %vm837
  %v839 = vsel %vm838, %v830, %v835
  %v840 = vrsqrt.pop %v731
  %v841 = vmul.f32 %v840, %v731
  %v842 = vmul.f32 %v841, %v840
  %v843 = vmul.f32 0.5, %v842
  %v844 = vsub.f32 1.5, %v843
  %v845 = vmul.f32 %v840, %v844
  %vm846 = vweird.f32 %v731
  %vm847 = vweird.f32 %v840
  %vm848 = vmor %vm846, %vm847
  %v849 = vsel %vm848, %v840, %v845
  %v850 = vrsqrt.pop %v732
  %v851 = vmul.f32 %v850, %v732
  %v852 = vmul.f32 %v851, %v850
  %v853 = vmul.f32 0.5, %v852
  %v854 = vsub.f32 1.5, %v853
  %v855 = vmul.f32 %v850, %v854
  %vm856 = vweird.f32 %v732
  %vm857 = vweird.f32 %v850
  %vm858 = vmor %vm856, %vm857
  %v859 = vsel %vm858, %v850, %v855
  %v860 = vrsqrt.pop %v733
  %v861 = vmul.f32 %v860, %v733
  %v862 = vmul.f32 %v861, %v860
  %v863 = vmul.f32 0.5, %v862
  %v864 = vsub.f32 1.5, %v863
  %v865 = vmul.f32 %v860, %v864
  %vm866 = vweird.f32 %v733
  %vm867 = vweird.f32 %v860
  %vm868 = vmor %vm866, %vm867
  %v869 = vsel %vm868, %v860, %v865
  %v870 = vrsqrt.pop %v734
  %v871 = vmul.f32 %v870, %v734
  %v872 = vmul.f32 %v871, %v870
  %v873 = vmul.f32 0.5, %v872
  %v874 = vsub.f32 1.5, %v873
  %v875 = vmul.f32 %v870, %v874
  %vm876 = vweird.f32 %v734
  %vm877 = vweird.f32 %v870
  %vm878 = vmor %vm876, %vm877
  %v879 = vsel %vm878, %v870, %v875
  %v880 = vrsqrt.pop %v735
  %v881 = vmul.f32 %v880, %v735
  %v882 = vmul.f32 %v881, %v880
  %v883 = vmul.f32 0.5, %v882
  %v884 = vsub.f32 1.5, %v883
  %v885 = vmul.f32 %v880, %v884
  %vm886 = vweird.f32 %v735
  %vm887 = vweird.f32 %v880
  %vm888 = vmor %vm886, %vm887
  %v889 = vsel %vm888, %v880, %v885
  %v890 = vrsqrt.pop %v736
  %v891 = vmul.f32 %v890, %v736
  %v892 = vmul.f32 %v891, %v890
  %v893 = vmul.f32 0.5, %v892
  %v894 = vsub.f32 1.5, %v893
  %v895 = vmul.f32 %v890, %v894
  %vm896 = vweird.f32 %v736
  %vm897 = vweird.f32 %v890
  %vm898 = vmor %vm896, %vm897
  %v899 = vsel %vm898, %v890, %v895
  %v900 = vrsqrt.pop %v737
  %v901 = vmul.f32 %v900, %v737
  %v902 = vmul.f32 %v901, %v900
  %v903 = vmul.f32 0.5, %v902
  %v904 = vsub.f32 1.5, %v903
  %v905 = vmul.f32 %v900, %v904
  %vm906 = vweird.f32 %v737
  %vm907 = vweird.f32 %v900
  %vm908 = vmor %vm906, %vm907
  %v909 = vsel %vm908, %v900, %v905
  %v910 = vrsqrt.pop %v738
  %v911 = vmul.f32 %v910, %v738
  %v912 = vmul.f32 %v911, %v910
  %v913 = vmul.f32 0.5, %v912
  %v914 = vsub.f32 1.5, %v913
  %v915 = vmul.f32 %v910, %v914
  %vm916 = vweird.f32 %v738
  %vm917 = vweird.f32 %v910
  %vm918 = vmor %vm916, %vm917
  %v919 = vsel %vm918, %v910, %v915
  %v920 = vrsqrt.pop %v739
  %v921 = vmul.f32 %v920, %v739
  %v922 = vmul.f32 %v921, %v920
  %v923 = vmul.f32 0.5, %v922
  %v924 = vsub.f32 1.5, %v923
  %v925 = vmul.f32 %v920, %v924
  %vm926 = vweird.f32 %v739
  %vm927 = vweird.f32 %v920
  %vm928 = vmor %vm926, %vm927
  %v929 = vsel %vm928, %v920, %v925
  %v930 = vrsqrt.pop %v740
  %v931 = vmul.f32 %v930, %v740
  %v932 = vmul.f32 %v931, %v930
  %v933 = vmul.f32 0.5, %v932
  %v934 = vsub.f32 1.5, %v933
  %v935 = vmul.f32 %v930, %v934
  %vm936 = vweird.f32 %v740
  %vm937 = vweird.f32 %v930
  %vm938 = vmor %vm936, %vm937
  %v939 = vsel %vm938, %v930, %v935
  %v940 = vrsqrt.pop %v741
  %v941 = vmul.f32 %v940, %v741
  %v942 = vmul.f32 %v941, %v940
  %v943 = vmul.f32 0.5, %v942
  %v944 = vsub.f32 1.5, %v943
  %v945 = vmul.f32 %v940, %v944
  %vm946 = vweird.f32 %v741
  %vm947 = vweird.f32 %v940
  %vm948 = vmor %vm946, %vm947
  %v949 = vsel %vm948, %v940, %v945
  %v950 = vrsqrt.pop %v742
  %v951 = vmul.f32 %v950, %v742
  %v952 = vmul.f32 %v951, %v950
  %v953 = vmul.f32 0.5, %v952
  %v954 = vsub.f32 1.5, %v953
  %v955 = vmul.f32 %v950, %v954
  %vm956 = vweird.f32 %v742
  %vm957 = vweird.f32 %v950
  %vm958 = vmor %vm956, %vm957
  %v959 = vsel %vm958, %v950, %v955
  %v960 = vrsqrt.pop %v743
  %v961 = vmul.f32 %v960, %v743
  %v962 = vmul.f32 %v961, %v960
  %v963 = vmul.f32 0.5, %v962
  %v964 = vsub.f32 1.5, %v963
  %v965 = vmul.f32 %v960, %v964
  %vm966 = vweird.f32 %v743
  %vm967 = vweird.f32 %v960
  %vm968 = vmor %vm966, %vm967
  %v969 = vsel %vm968, %v960, %v965
  %v970 = vrsqrt.pop %v744
  %v971 = vmul.f32 %v970, %v744
  %v972 = vmul.f32 %v971, %v970
  %v973 = vmul.f32 0.5, %v972
  %v974 = vsub.f32 1.5, %v973
  %v975 = vmul.f32 %v970, %v974
  %vm976 = vweird.f32 %v744
  %vm977 = vweird.f32 %v970
  %vm978 = vmor %vm976, %vm977
  %v979 = vsel %vm978, %v970, %v975
  %v980 = vrsqrt.pop %v745
  %v981 = vmul.f32 %v980, %v745
  %v982 = vmul.f32 %v981, %v980
  %v983 = vmul.f32 0.5, %v982
  %v984 = vsub.f32 1.5, %v983
  %v985 = vmul.f32 %v980, %v984
  %vm986 = vweird.f32 %v745
  %vm987 = vweird.f32 %v980
  %vm988 = vmor %vm986, %vm987
  %v989 = vsel %vm988, %v980, %v985
  %v990 = vrsqrt.pop %v746
  %v991 = vmul.f32 %v990, %v746
  %v992 = vmul.f32 %v991, %v990
  %v993 = vmul.f32 0.5, %v992
  %v994 = vsub.f32 1.5, %v993
  %v995 = vmul.f32 %v990, %v994
  %vm996 = vweird.f32 %v746
  %vm997 = vweird.f32 %v990
  %vm998 = vmor %vm996, %vm997
  %v999 = vsel %vm998, %v990, %v995
  %v1000 = vrsqrt.pop %v747
  %v1001 = vmul.f32 %v1000, %v747
  %v1002 = vmul.f32 %v1001, %v1000
  %v1003 = vmul.f32 0.5, %v1002
  %v1004 = vsub.f32 1.5, %v1003
  %v1005 = vmul.f32 %v1000, %v1004
  %vm1006 = vweird.f32 %v747
  %vm1007 = vweird.f32 %v1000
  %vm1008 = vmor %vm1006, %vm1007
  %v1009 = vsel %vm1008, %v1000, %v1005
  %v1010 = vrsqrt.pop %v748
  %v1011 = vmul.f32 %v1010, %v748
  %v1012 = vmul.f32 %v1011, %v1010
  %v1013 = vmul.f32 0.5, %v1012
  %v1014 = vsub.f32 1.5, %v1013
  %v1015 = vmul.f32 %v1010, %v1014
  %vm1016 = vweird.f32 %v748
  %vm1017 = vweird.f32 %v1010
  %vm1018 = vmor %vm1016, %vm1017
  %v1019 = vsel %vm1018, %v1010, %v1015
  %v1020 = vrsqrt.pop %v749
  %v1021 = vmul.f32 %v1020, %v749
  %v1022 = vmul.f32 %v1021, %v1020
  %v1023 = vmul.f32 0.5, %v1022
  %v1024 = vsub.f32 1.5, %v1023
  %v1025 = vmul.f32 %v1020, %v1024
  %vm1026 = vweird.f32 %v749
  %vm1027 = vweird.f32 %v1020
  %vm1028 = vmor %vm1026, %vm1027
  %v1029 = vsel %vm1028, %v1020, %v1025
  %v1030 = vrsqrt.pop %v750
  %v1031 = vmul.f32 %v1030, %v750
  %v1032 = vmul.f32 %v1031, %v1030
  %v1033 = vmul.f32 0.5, %v1032
  %v1034 = vsub.f32 1.5, %v1033
  %v1035 = vmul.f32 %v1030, %v1034
  %vm1036 = vweird.f32 %v750
  %vm1037 = vweird.f32 %v1030
  %vm1038 = vmor %vm1036, %vm1037
  %v1039 = vsel %vm1038, %v1030, %v1035
  %v1040 = vrsqrt.pop %v751
  %v1041 = vmul.f32 %v1040, %v751
  %v1042 = vmul.f32 %v1041, %v1040
  %v1043 = vmul.f32 0.5, %v1042
  %v1044 = vsub.f32 1.5, %v1043
  %v1045 = vmul.f32 %v1040, %v1044
  %vm1046 = vweird.f32 %v751
  %vm1047 = vweird.f32 %v1040
  %vm1048 = vmor %vm1046, %vm1047
  %v1049 = vsel %vm1048, %v1040, %v1045
  %v1050 = vrsqrt.pop %v752
  %v1051 = vmul.f32 %v1050, %v752
  %v1052 = vmul.f32 %v1051, %v1050
  %v1053 = vmul.f32 0.5, %v1052
  %v1054 = vsub.f32 1.5, %v1053
  %v1055 = vmul.f32 %v1050, %v1054
  %vm1056 = vweird.f32 %v752
  %vm1057 = vweird.f32 %v1050
  %vm1058 = vmor %vm1056, %vm1057
  %v1059 = vsel %vm1058, %v1050, %v1055
  %v1060 = vrsqrt.pop %v753
  %v1061 = vmul.f32 %v1060, %v753
  %v1062 = vmul.f32 %v1061, %v1060
  %v1063 = vmul.f32 0.5, %v1062
  %v1064 = vsub.f32 1.5, %v1063
  %v1065 = vmul.f32 %v1060, %v1064
  %vm1066 = vweird.f32 %v753
  %vm1067 = vweird.f32 %v1060
  %vm1068 = vmor %vm1066, %vm1067
  %v1069 = vsel %vm1068, %v1060, %v1065
  %v1070 = vrsqrt.pop %v754
  %v1071 = vmul.f32 %v1070, %v754
  %v1072 = vmul.f32 %v1071, %v1070
  %v1073 = vmul.f32 0.5, %v1072
  %v1074 = vsub.f32 1.5, %v1073
  %v1075 = vmul.f32 %v1070, %v1074
  %vm1076 = vweird.f32 %v754
  %vm1077 = vweird.f32 %v1070
  %vm1078 = vmor %vm1076, %vm1077
  %v1079 = vsel %vm1078, %v1070, %v1075
  %v1080 = vrsqrt.pop %v755
  %v1081 = vmul.f32 %v1080, %v755
  %v1082 = vmul.f32 %v1081, %v1080
  %v1083 = vmul.f32 0.5, %v1082
  %v1084 = vsub.f32 1.5, %v1083
  %v1085 = vmul.f32 %v1080, %v1084
  %vm1086 = vweird.f32 %v755
  %vm1087 = vweird.f32 %v1080
  %vm1088 = vmor %vm1086, %vm1087
  %v1089 = vsel %vm1088, %v1080, %v1085
  %v1090 = vrsqrt.pop %v756
  %v1091 = vmul.f32 %v1090, %v756
  %v1092 = vmul.f32 %v1091, %v1090
  %v1093 = vmul.f32 0.5, %v1092
  %v1094 = vsub.f32 1.5, %v1093
  %v1095 = vmul.f32 %v1090, %v1094
  %vm1096 = vweird.f32 %v756
  %vm1097 = vweird.f32 %v1090
  %vm1098 = vmor %vm1096, %vm1097
  %v1099 = vsel %vm1098, %v1090, %v1095
  %v1100 = vrsqrt.pop %v757
  %v1101 = vmul.f32 %v1100, %v757
  %v1102 = vmul.f32 %v1101, %v1100
  %v1103 = vmul.f32 0.5, %v1102
  %v1104 = vsub.f32 1.5, %v1103
  %v1105 = vmul.f32 %v1100, %v1104
  %vm1106 = vweird.f32 %v757
  %vm1107 = vweird.f32 %v1100
  %vm1108 = vmor %vm1106, %vm1107
  %v1109 = vsel %vm1108, %v1100, %v1105
  %v1110 = vrsqrt.pop %v758
  %v1111 = vmul.f32 %v1110, %v758
  %v1112 = vmul.f32 %v1111, %v1110
  %v1113 = vmul.f32 0.5, %v1112
  %v1114 = vsub.f32 1.5, %v1113
  %v1115 = vmul.f32 %v1110, %v1114
  %vm1116 = vweird.f32 %v758
  %vm1117 = vweird.f32 %v1110
  %vm1118 = vmor %vm1116, %vm1117
  %v1119 = vsel %vm1118, %v1110, %v1115
  %v1120 = vrsqrt.pop %v759
  %v1121 = vmul.f32 %v1120, %v759
  %v1122 = vmul.f32 %v1121, %v1120
  %v1123 = vmul.f32 0.5, %v1122
  %v1124 = vsub.f32 1.5, %v1123
  %v1125 = vmul.f32 %v1120, %v1124
  %vm1126 = vweird.f32 %v759
  %vm1127 = vweird.f32 %v1120
  %vm1128 = vmor %vm1126, %vm1127
  %v1129 = vsel %vm1128, %v1120, %v1125
  %v1130 = vrsqrt.pop %v760
  %v1131 = vmul.f32 %v1130, %v760
  %v1132 = vmul.f32 %v1131, %v1130
  %v1133 = vmul.f32 0.5, %v1132
  %v1134 = vsub.f32 1.5, %v1133
  %v1135 = vmul.f32 %v1130, %v1134
  %vm1136 = vweird.f32 %v760
  %vm1137 = vweird.f32 %v1130
  %vm1138 = vmor %vm1136, %vm1137
  %v1139 = vsel %vm1138, %v1130, %v1135
  %v1140 = vrsqrt.pop %v761
  %v1141 = vmul.f32 %v1140, %v761
  %v1142 = vmul.f32 %v1141, %v1140
  %v1143 = vmul.f32 0.5, %v1142
  %v1144 = vsub.f32 1.5, %v1143
  %v1145 = vmul.f32 %v1140, %v1144
  %vm1146 = vweird.f32 %v761
  %vm1147 = vweird.f32 %v1140
  %vm1148 = vmor %vm1146, %vm1147
  %v1149 = vsel %vm1148, %v1140, %v1145
  %v1150 = vrsqrt.pop %v762
  %v1151 = vmul.f32 %v1150, %v762
  %v1152 = vmul.f32 %v1151, %v1150
  %v1153 = vmul.f32 0.5, %v1152
  %v1154 = vsub.f32 1.5, %v1153
  %v1155 = vmul.f32 %v1150, %v1154
  %vm1156 = vweird.f32 %v762
  %vm1157 = vweird.f32 %v1150
  %vm1158 = vmor %vm1156, %vm1157
  %v1159 = vsel %vm1158, %v1150, %v1155
  %v1160 = vrsqrt.pop %v763
  %v1161 = vmul.f32 %v1160, %v763
  %v1162 = vmul.f32 %v1161, %v1160
  %v1163 = vmul.f32 0.5, %v1162
  %v1164 = vsub.f32 1.5, %v1163
  %v1165 = vmul.f32 %v1160, %v1164
  %vm1166 = vweird.f32 %v763
  %vm1167 = vweird.f32 %v1160
  %vm1168 = vmor %vm1166, %vm1167
  %v1169 = vsel %vm1168, %v1160, %v1165
  %v1170 = vrsqrt.pop %v764
  %v1171 = vmul.f32 %v1170, %v764
  %v1172 = vmul.f32 %v1171, %v1170
  %v1173 = vmul.f32 0.5, %v1172
  %v1174 = vsub.f32 1.5, %v1173
  %v1175 = vmul.f32 %v1170, %v1174
  %vm1176 = vweird.f32 %v764
  %vm1177 = vweird.f32 %v1170
  %vm1178 = vmor %vm1176, %vm1177
  %v1179 = vsel %vm1178, %v1170, %v1175
  %v1180 = vrsqrt.pop %v765
  %v1181 = vmul.f32 %v1180, %v765
  %v1182 = vmul.f32 %v1181, %v1180
  %v1183 = vmul.f32 0.5, %v1182
  %v1184 = vsub.f32 1.5, %v1183
  %v1185 = vmul.f32 %v1180, %v1184
  %vm1186 = vweird.f32 %v765
  %vm1187 = vweird.f32 %v1180
  %vm1188 = vmor %vm1186, %vm1187
  %v1189 = vsel %vm1188, %v1180, %v1185
  %v1190 = vrsqrt.pop %v766
  %v1191 = vmul.f32 %v1190, %v766
  %v1192 = vmul.f32 %v1191, %v1190
  %v1193 = vmul.f32 0.5, %v1192
  %v1194 = vsub.f32 1.5, %v1193
  %v1195 = vmul.f32 %v1190, %v1194
  %vm1196 = vweird.f32 %v766
  %vm1197 = vweird.f32 %v1190
  %vm1198 = vmor %vm1196, %vm1197
  %v1199 = vsel %vm1198, %v1190, %v1195
  %v1200 = vrsqrt.pop %v767
  %v1201 = vmul.f32 %v1200, %v767
  %v1202 = vmul.f32 %v1201, %v1200
  %v1203 = vmul.f32 0.5, %v1202
  %v1204 = vsub.f32 1.5, %v1203
  %v1205 = vmul.f32 %v1200, %v1204
  %vm1206 = vweird.f32 %v767
  %vm1207 = vweird.f32 %v1200
  %vm1208 = vmor %vm1206, %vm1207
  %v1209 = vsel %vm1208, %v1200, %v1205
  %v1210 = vrsqrt.pop %v768
  %v1211 = vmul.f32 %v1210, %v768
  %v1212 = vmul.f32 %v1211, %v1210
  %v1213 = vmul.f32 0.5, %v1212
  %v1214 = vsub.f32 1.5, %v1213
  %v1215 = vmul.f32 %v1210, %v1214
  %vm1216 = vweird.f32 %v768
  %vm1217 = vweird.f32 %v1210
  %vm1218 = vmor %vm1216, %vm1217
  %v1219 = vsel %vm1218, %v1210, %v1215
  %v1220 = vrsqrt.pop %v769
  %v1221 = vmul.f32 %v1220, %v769
  %v1222 = vmul.f32 %v1221, %v1220
  %v1223 = vmul.f32 0.5, %v1222
  %v1224 = vsub.f32 1.5, %v1223
  %v1225 = vmul.f32 %v1220, %v1224
  %vm1226 = vweird.f32 %v769
  %vm1227 = vweird.f32 %v1220
  %vm1228 = vmor %vm1226, %vm1227
  %v1229 = vsel %vm1228, %v1220, %v1225
  %v1230 = vrsqrt.pop %v770
  %v1231 = vmul.f32 %v1230, %v770
  %v1232 = vmul.f32 %v1231, %v1230
  %v1233 = vmul.f32 0.5, %v1232
  %v1234 = vsub.f32 1.5, %v1233
  %v1235 = vmul.f32 %v1230, %v1234
  %vm1236 = vweird.f32 %v770
  %vm1237 = vweird.f32 %v1230
  %vm1238 = vmor %vm1236, %vm1237
  %v1239 = vsel %vm1238, %v1230, %v1235
  %v1240 = vrsqrt.pop %v771
  %v1241 = vmul.f32 %v1240, %v771
  %v1242 = vmul.f32 %v1241, %v1240
  %v1243 = vmul.f32 0.5, %v1242
  %v1244 = vsub.f32 1.5, %v1243
  %v1245 = vmul.f32 %v1240, %v1244
  %vm1246 = vweird.f32 %v771
  %vm1247 = vweird.f32 %v1240
  %vm1248 = vmor %vm1246, %vm1247
  %v1249 = vsel %vm1248, %v1240, %v1245
  %v1250 = vrsqrt.pop %v772
  %v1251 = vmul.f32 %v1250, %v772
  %v1252 = vmul.f32 %v1251, %v1250
  %v1253 = vmul.f32 0.5, %v1252
  %v1254 = vsub.f32 1.5, %v1253
  %v1255 = vmul.f32 %v1250, %v1254
  %vm1256 = vweird.f32 %v772
  %vm1257 = vweird.f32 %v1250
  %vm1258 = vmor %vm1256, %vm1257
  %v1259 = vsel %vm1258, %v1250, %v1255
  %v1260 = vrsqrt.pop %v773
  %v1261 = vmul.f32 %v1260, %v773
  %v1262 = vmul.f32 %v1261, %v1260
  %v1263 = vmul.f32 0.5, %v1262
  %v1264 = vsub.f32 1.5, %v1263
  %v1265 = vmul.f32 %v1260, %v1264
  %vm1266 = vweird.f32 %v773
  %vm1267 = vweird.f32 %v1260
  %vm1268 = vmor %vm1266, %vm1267
  %v1269 = vsel %vm1268, %v1260, %v1265
  %v1270 = vrsqrt.pop %v774
  %v1271 = vmul.f32 %v1270, %v774
  %v1272 = vmul.f32 %v1271, %v1270
  %v1273 = vmul.f32 0.5, %v1272
  %v1274 = vsub.f32 1.5, %v1273
  %v1275 = vmul.f32 %v1270, %v1274
  %vm1276 = vweird.f32 %v774
  %vm1277 = vweird.f32 %v1270
  %vm1278 = vmor %vm1276, %vm1277
  %v1279 = vsel %vm1278, %v1270, %v1275
  %v1280 = vrsqrt.pop %v775
  %v1281 = vmul.f32 %v1280, %v775
  %v1282 = vmul.f32 %v1281, %v1280
  %v1283 = vmul.f32 0.5, %v1282
  %v1284 = vsub.f32 1.5, %v1283
  %v1285 = vmul.f32 %v1280, %v1284
  %vm1286 = vweird.f32 %v775
  %vm1287 = vweird.f32 %v1280
  %vm1288 = vmor %vm1286, %vm1287
  %v1289 = vsel %vm1288, %v1280, %v1285
  %v1290 = vrsqrt.pop %v776
  %v1291 = vmul.f32 %v1290, %v776
  %v1292 = vmul.f32 %v1291, %v1290
  %v1293 = vmul.f32 0.5, %v1292
  %v1294 = vsub.f32 1.5, %v1293
  %v1295 = vmul.f32 %v1290, %v1294
  %vm1296 = vweird.f32 %v776
  %vm1297 = vweird.f32 %v1290
  %vm1298 = vmor %vm1296, %vm1297
  %v1299 = vsel %vm1298, %v1290, %v1295
  %v1300 = vrsqrt.pop %v777
  %v1301 = vmul.f32 %v1300, %v777
  %v1302 = vmul.f32 %v1301, %v1300
  %v1303 = vmul.f32 0.5, %v1302
  %v1304 = vsub.f32 1.5, %v1303
  %v1305 = vmul.f32 %v1300, %v1304
  %vm1306 = vweird.f32 %v777
  %vm1307 = vweird.f32 %v1300
  %vm1308 = vmor %vm1306, %vm1307
  %v1309 = vsel %vm1308, %v1300, %v1305
  %v1310 = vrsqrt.pop %v778
  %v1311 = vmul.f32 %v1310, %v778
  %v1312 = vmul.f32 %v1311, %v1310
  %v1313 = vmul.f32 0.5, %v1312
  %v1314 = vsub.f32 1.5, %v1313
  %v1315 = vmul.f32 %v1310, %v1314
  %vm1316 = vweird.f32 %v778
  %vm1317 = vweird.f32 %v1310
  %vm1318 = vmor %vm1316, %vm1317
  %v1319 = vsel %vm1318, %v1310, %v1315
  %v1320 = vrsqrt.pop %v779
  %v1321 = vmul.f32 %v1320, %v779
  %v1322 = vmul.f32 %v1321, %v1320
  %v1323 = vmul.f32 0.5, %v1322
  %v1324 = vsub.f32 1.5, %v1323
  %v1325 = vmul.f32 %v1320, %v1324
  %vm1326 = vweird.f32 %v779
  %vm1327 = vweird.f32 %v1320
  %vm1328 = vmor %vm1326, %vm1327
  %v1329 = vsel %vm1328, %v1320, %v1325
  %v1330 = vrsqrt.pop %v780
  %v1331 = vmul.f32 %v1330, %v780
  %v1332 = vmul.f32 %v1331, %v1330
  %v1333 = vmul.f32 0.5, %v1332
  %v1334 = vsub.f32 1.5, %v1333
  %v1335 = vmul.f32 %v1330, %v1334
  %vm1336 = vweird.f32 %v780
  %vm1337 = vweird.f32 %v1330
  %vm1338 = vmor %vm1336, %vm1337
  %v1339 = vsel %vm1338, %v1330, %v1335
  %v1340 = vrsqrt.pop %v781
  %v1341 = vmul.f32 %v1340, %v781
  %v1342 = vmul.f32 %v1341, %v1340
  %v1343 = vmul.f32 0.5, %v1342
  %v1344 = vsub.f32 1.5, %v1343
  %v1345 = vmul.f32 %v1340, %v1344
  %vm1346 = vweird.f32 %v781
  %vm1347 = vweird.f32 %v1340
  %vm1348 = vmor %vm1346, %vm1347
  %v1349 = vsel %vm1348, %v1340, %v1345
  %v1350 = vrsqrt.pop %v782
  %v1351 = vmul.f32 %v1350, %v782
  %v1352 = vmul.f32 %v1351, %v1350
  %v1353 = vmul.f32 0.5, %v1352
  %v1354 = vsub.f32 1.5, %v1353
  %v1355 = vmul.f32 %v1350, %v1354
  %vm1356 = vweird.f32 %v782
  %vm1357 = vweird.f32 %v1350
  %vm1358 = vmor %vm1356, %vm1357
  %v1359 = vsel %vm1358, %v1350, %v1355
  %v1360 = vrsqrt.pop %v783
  %v1361 = vmul.f32 %v1360, %v783
  %v1362 = vmul.f32 %v1361, %v1360
  %v1363 = vmul.f32 0.5, %v1362
  %v1364 = vsub.f32 1.5, %v1363
  %v1365 = vmul.f32 %v1360, %v1364
  %vm1366 = vweird.f32 %v783
  %vm1367 = vweird.f32 %v1360
  %vm1368 = vmor %vm1366, %vm1367
  %v1369 = vsel %vm1368, %v1360, %v1365
  %v1370 = vrsqrt.pop %v784
  %v1371 = vmul.f32 %v1370, %v784
  %v1372 = vmul.f32 %v1371, %v1370
  %v1373 = vmul.f32 0.5, %v1372
  %v1374 = vsub.f32 1.5, %v1373
  %v1375 = vmul.f32 %v1370, %v1374
  %vm1376 = vweird.f32 %v784
  %vm1377 = vweird.f32 %v1370
  %vm1378 = vmor %vm1376, %vm1377
  %v1379 = vsel %vm1378, %v1370, %v1375
  %v1380 = vrsqrt.pop %v785
  %v1381 = vmul.f32 %v1380, %v785
  %v1382 = vmul.f32 %v1381, %v1380
  %v1383 = vmul.f32 0.5, %v1382
  %v1384 = vsub.f32 1.5, %v1383
  %v1385 = vmul.f32 %v1380, %v1384
  %vm1386 = vweird.f32 %v785
  %vm1387 = vweird.f32 %v1380
  %vm1388 = vmor %vm1386, %vm1387
  %v1389 = vsel %vm1388, %v1380, %v1385
  %v1390 = vrsqrt.pop %v786
  %v1391 = vmul.f32 %v1390, %v786
  %v1392 = vmul.f32 %v1391, %v1390
  %v1393 = vmul.f32 0.5, %v1392
  %v1394 = vsub.f32 1.5, %v1393
  %v1395 = vmul.f32 %v1390, %v1394
  %vm1396 = vweird.f32 %v786
  %vm1397 = vweird.f32 %v1390
  %vm1398 = vmor %vm1396, %vm1397
  %v1399 = vsel %vm1398, %v1390, %v1395
  %v1400 = vrsqrt.pop %v787
  %v1401 = vmul.f32 %v1400, %v787
  %v1402 = vmul.f32 %v1401, %v1400
  %v1403 = vmul.f32 0.5, %v1402
  %v1404 = vsub.f32 1.5, %v1403
  %v1405 = vmul.f32 %v1400, %v1404
  %vm1406 = vweird.f32 %v787
  %vm1407 = vweird.f32 %v1400
  %vm1408 = vmor %vm1406, %vm1407
  %v1409 = vsel %vm1408, %v1400, %v1405
  %v1410 = vrsqrt.pop %v788
  %v1411 = vmul.f32 %v1410, %v788
  %v1412 = vmul.f32 %v1411, %v1410
  %v1413 = vmul.f32 0.5, %v1412
  %v1414 = vsub.f32 1.5, %v1413
  %v1415 = vmul.f32 %v1410, %v1414
  %vm1416 = vweird.f32 %v788
  %vm1417 = vweird.f32 %v1410
  %vm1418 = vmor %vm1416, %vm1417
  %v1419 = vsel %vm1418, %v1410, %v1415
  %v1420 = vrsqrt.pop %v789
  %v1421 = vmul.f32 %v1420, %v789
  %v1422 = vmul.f32 %v1421, %v1420
  %v1423 = vmul.f32 0.5, %v1422
  %v1424 = vsub.f32 1.5, %v1423
  %v1425 = vmul.f32 %v1420, %v1424
  %vm1426 = vweird.f32 %v789
  %vm1427 = vweird.f32 %v1420
  %vm1428 = vmor %vm1426, %vm1427
  %v1429 = vsel %vm1428, %v1420, %v1425
  %v1430 = vld [vmem:[%s1] sm:$0x1]
  %v1431 = vld [vmem:[%s2] sm:$0x1]
  %v1432 = vmul.f32 %v342, %v799
  %v1433 = vmul.f32 %v343, %v809
  %v1434 = vmul.f32 %v344, %v819
  %v1435 = vmul.f32 %v345, %v829
  %v1436 = vmul.f32 %v346, %v839
  %v1437 = vmul.f32 %v347, %v849
  %v1438 = vmul.f32 %v348, %v859
  %v1439 = vmul.f32 %v349, %v869
  %v1440 = vmul.f32 %v350, %v879
  %v1441 = vmul.f32 %v351, %v889
  %v1442 = vmul.f32 %v352, %v899
  %v1443 = vmul.f32 %v353, %v909
  %v1444 = vmul.f32 %v354, %v919
  %v1445 = vmul.f32 %v355, %v929
  %v1446 = vmul.f32 %v356, %v939
  %v1447 = vmul.f32 %v357, %v949
  %v1448 = vmul.f32 %v358, %v959
  %v1449 = vmul.f32 %v359, %v969
  %v1450 = vmul.f32 %v360, %v979
  %v1451 = vmul.f32 %v361, %v989
  %v1452 = vmul.f32 %v362, %v999
  %v1453 = vmul.f32 %v363, %v1009
  %v1454 = vmul.f32 %v364, %v1019
  %v1455 = vmul.f32 %v365, %v1029
  %v1456 = vmul.f32 %v366, %v1039
  %v1457 = vmul.f32 %v367, %v1049
  %v1458 = vmul.f32 %v368, %v1059
  %v1459 = vmul.f32 %v369, %v1069
  %v1460 = vmul.f32 %v370, %v1079
  %v1461 = vmul.f32 %v371, %v1089
  %v1462 = vmul.f32 %v372, %v1099
  %v1463 = vmul.f32 %v373, %v1109
  %v1464 = vmul.f32 %v374, %v1119
  %v1465 = vmul.f32 %v375, %v1129
  %v1466 = vmul.f32 %v376, %v1139
  %v1467 = vmul.f32 %v377, %v1149
  %v1468 = vmul.f32 %v378, %v1159
  %v1469 = vmul.f32 %v379, %v1169
  %v1470 = vmul.f32 %v380, %v1179
  %v1471 = vmul.f32 %v381, %v1189
  %v1472 = vmul.f32 %v382, %v1199
  %v1473 = vmul.f32 %v383, %v1209
  %v1474 = vmul.f32 %v384, %v1219
  %v1475 = vmul.f32 %v385, %v1229
  %v1476 = vmul.f32 %v386, %v1239
  %v1477 = vmul.f32 %v387, %v1249
  %v1478 = vmul.f32 %v388, %v1259
  %v1479 = vmul.f32 %v389, %v1269
  %v1480 = vmul.f32 %v390, %v1279
  %v1481 = vmul.f32 %v391, %v1289
  %v1482 = vmul.f32 %v392, %v1299
  %v1483 = vmul.f32 %v393, %v1309
  %v1484 = vmul.f32 %v394, %v1319
  %v1485 = vmul.f32 %v395, %v1329
  %v1486 = vmul.f32 %v396, %v1339
  %v1487 = vmul.f32 %v397, %v1349
  %v1488 = vmul.f32 %v398, %v1359
  %v1489 = vmul.f32 %v399, %v1369
  %v1490 = vmul.f32 %v400, %v1379
  %v1491 = vmul.f32 %v401, %v1389
  %v1492 = vmul.f32 %v402, %v1399
  %v1493 = vmul.f32 %v403, %v1409
  %v1494 = vmul.f32 %v404, %v1419
  %v1495 = vmul.f32 %v405, %v1429
  %v1497 = vperm.slane %v1430, 0
  %v1499 = vmul.f32 %v1432, %v1497
  %v1500 = vmul.f32 %v1433, %v1497
  %v1501 = vmul.f32 %v1434, %v1497
  %v1502 = vmul.f32 %v1435, %v1497
  %v1503 = vmul.f32 %v1436, %v1497
  %v1504 = vmul.f32 %v1437, %v1497
  %v1505 = vmul.f32 %v1438, %v1497
  %v1506 = vmul.f32 %v1439, %v1497
  %v1507 = vmul.f32 %v1440, %v1497
  %v1508 = vmul.f32 %v1441, %v1497
  %v1509 = vmul.f32 %v1442, %v1497
  %v1510 = vmul.f32 %v1443, %v1497
  %v1511 = vmul.f32 %v1444, %v1497
  %v1512 = vmul.f32 %v1445, %v1497
  %v1513 = vmul.f32 %v1446, %v1497
  %v1514 = vmul.f32 %v1447, %v1497
  %v1515 = vmul.f32 %v1448, %v1497
  %v1516 = vmul.f32 %v1449, %v1497
  %v1517 = vmul.f32 %v1450, %v1497
  %v1518 = vmul.f32 %v1451, %v1497
  %v1519 = vmul.f32 %v1452, %v1497
  %v1520 = vmul.f32 %v1453, %v1497
  %v1521 = vmul.f32 %v1454, %v1497
  %v1522 = vmul.f32 %v1455, %v1497
  %v1523 = vmul.f32 %v1456, %v1497
  %v1524 = vmul.f32 %v1457, %v1497
  %v1525 = vmul.f32 %v1458, %v1497
  %v1526 = vmul.f32 %v1459, %v1497
  %v1527 = vmul.f32 %v1460, %v1497
  %v1528 = vmul.f32 %v1461, %v1497
  %v1529 = vmul.f32 %v1462, %v1497
  %v1530 = vmul.f32 %v1463, %v1497
  %v1531 = vmul.f32 %v1464, %v1497
  %v1532 = vmul.f32 %v1465, %v1497
  %v1533 = vmul.f32 %v1466, %v1497
  %v1534 = vmul.f32 %v1467, %v1497
  %v1535 = vmul.f32 %v1468, %v1497
  %v1536 = vmul.f32 %v1469, %v1497
  %v1537 = vmul.f32 %v1470, %v1497
  %v1538 = vmul.f32 %v1471, %v1497
  %v1539 = vmul.f32 %v1472, %v1497
  %v1540 = vmul.f32 %v1473, %v1497
  %v1541 = vmul.f32 %v1474, %v1497
  %v1542 = vmul.f32 %v1475, %v1497
  %v1543 = vmul.f32 %v1476, %v1497
  %v1544 = vmul.f32 %v1477, %v1497
  %v1545 = vmul.f32 %v1478, %v1497
  %v1546 = vmul.f32 %v1479, %v1497
  %v1547 = vmul.f32 %v1480, %v1497
  %v1548 = vmul.f32 %v1481, %v1497
  %v1549 = vmul.f32 %v1482, %v1497
  %v1550 = vmul.f32 %v1483, %v1497
  %v1551 = vmul.f32 %v1484, %v1497
  %v1552 = vmul.f32 %v1485, %v1497
  %v1553 = vmul.f32 %v1486, %v1497
  %v1554 = vmul.f32 %v1487, %v1497
  %v1555 = vmul.f32 %v1488, %v1497
  %v1556 = vmul.f32 %v1489, %v1497
  %v1557 = vmul.f32 %v1490, %v1497
  %v1558 = vmul.f32 %v1491, %v1497
  %v1559 = vmul.f32 %v1492, %v1497
  %v1560 = vmul.f32 %v1493, %v1497
  %v1561 = vmul.f32 %v1494, %v1497
  %v1562 = vmul.f32 %v1495, %v1497
  %v1564 = vperm.slane %v1431, 0
  %v1566 = vadd.f32 %v1499, %v1564
  %v1567 = vadd.f32 %v1500, %v1564
  %v1568 = vadd.f32 %v1501, %v1564
  %v1569 = vadd.f32 %v1502, %v1564
  %v1570 = vadd.f32 %v1503, %v1564
  %v1571 = vadd.f32 %v1504, %v1564
  %v1572 = vadd.f32 %v1505, %v1564
  %v1573 = vadd.f32 %v1506, %v1564
  %v1574 = vadd.f32 %v1507, %v1564
  %v1575 = vadd.f32 %v1508, %v1564
  %v1576 = vadd.f32 %v1509, %v1564
  %v1577 = vadd.f32 %v1510, %v1564
  %v1578 = vadd.f32 %v1511, %v1564
  %v1579 = vadd.f32 %v1512, %v1564
  %v1580 = vadd.f32 %v1513, %v1564
  %v1581 = vadd.f32 %v1514, %v1564
  %v1582 = vadd.f32 %v1515, %v1564
  %v1583 = vadd.f32 %v1516, %v1564
  %v1584 = vadd.f32 %v1517, %v1564
  %v1585 = vadd.f32 %v1518, %v1564
  %v1586 = vadd.f32 %v1519, %v1564
  %v1587 = vadd.f32 %v1520, %v1564
  %v1588 = vadd.f32 %v1521, %v1564
  %v1589 = vadd.f32 %v1522, %v1564
  %v1590 = vadd.f32 %v1523, %v1564
  %v1591 = vadd.f32 %v1524, %v1564
  %v1592 = vadd.f32 %v1525, %v1564
  %v1593 = vadd.f32 %v1526, %v1564
  %v1594 = vadd.f32 %v1527, %v1564
  %v1595 = vadd.f32 %v1528, %v1564
  %v1596 = vadd.f32 %v1529, %v1564
  %v1597 = vadd.f32 %v1530, %v1564
  %v1598 = vadd.f32 %v1531, %v1564
  %v1599 = vadd.f32 %v1532, %v1564
  %v1600 = vadd.f32 %v1533, %v1564
  %v1601 = vadd.f32 %v1534, %v1564
  %v1602 = vadd.f32 %v1535, %v1564
  %v1603 = vadd.f32 %v1536, %v1564
  %v1604 = vadd.f32 %v1537, %v1564
  %v1605 = vadd.f32 %v1538, %v1564
  %v1606 = vadd.f32 %v1539, %v1564
  %v1607 = vadd.f32 %v1540, %v1564
  %v1608 = vadd.f32 %v1541, %v1564
  %v1609 = vadd.f32 %v1542, %v1564
  %v1610 = vadd.f32 %v1543, %v1564
  %v1611 = vadd.f32 %v1544, %v1564
  %v1612 = vadd.f32 %v1545, %v1564
  %v1613 = vadd.f32 %v1546, %v1564
  %v1614 = vadd.f32 %v1547, %v1564
  %v1615 = vadd.f32 %v1548, %v1564
  %v1616 = vadd.f32 %v1549, %v1564
  %v1617 = vadd.f32 %v1550, %v1564
  %v1618 = vadd.f32 %v1551, %v1564
  %v1619 = vadd.f32 %v1552, %v1564
  %v1620 = vadd.f32 %v1553, %v1564
  %v1621 = vadd.f32 %v1554, %v1564
  %v1622 = vadd.f32 %v1555, %v1564
  %v1623 = vadd.f32 %v1556, %v1564
  %v1624 = vadd.f32 %v1557, %v1564
  %v1625 = vadd.f32 %v1558, %v1564
  %v1626 = vadd.f32 %v1559, %v1564
  %v1627 = vadd.f32 %v1560, %v1564
  %v1628 = vadd.f32 %v1561, %v1564
  %v1629 = vadd.f32 %v1562, %v1564
  %1630 = vst.msk [vmem:[%s3] sm:$0xff] %vm78, %v1566
  %1631 = vst.msk [vmem:[%s3 + $0x8] sm:$0xff] %vm78, %v1567
  %1632 = vst.msk [vmem:[%s3 + $0x10] sm:$0xff] %vm78, %v1568
  %1633 = vst.msk [vmem:[%s3 + $0x18] sm:$0xff] %vm78, %v1569
  %1634 = vst.msk [vmem:[%s3 + $0x20] sm:$0xff] %vm78, %v1570
  %1635 = vst.msk [vmem:[%s3 + $0x28] sm:$0xff] %vm78, %v1571
  %1636 = vst.msk [vmem:[%s3 + $0x30] sm:$0xff] %vm78, %v1572
  %1637 = vst.msk [vmem:[%s3 + $0x38] sm:$0xff] %vm78, %v1573
  %1638 = vst.msk [vmem:[%s3 + $0x40] sm:$0xff] %vm78, %v1574
  %1639 = vst.msk [vmem:[%s3 + $0x48] sm:$0xff] %vm78, %v1575
  %1640 = vst.msk [vmem:[%s3 + $0x50] sm:$0xff] %vm78, %v1576
  %1641 = vst.msk [vmem:[%s3 + $0x58] sm:$0xff] %vm78, %v1577
  %1642 = vst.msk [vmem:[%s3 + $0x60] sm:$0xff] %vm78, %v1578
  %1643 = vst.msk [vmem:[%s3 + $0x68] sm:$0xff] %vm78, %v1579
  %1644 = vst.msk [vmem:[%s3 + $0x70] sm:$0xff] %vm78, %v1580
  %1645 = vst.msk [vmem:[%s3 + $0x78] sm:$0xff] %vm78, %v1581
  %1646 = vst.msk [vmem:[%s3 + $0x80] sm:$0xff] %vm78, %v1582
  %1647 = vst.msk [vmem:[%s3 + $0x88] sm:$0xff] %vm78, %v1583
  %1648 = vst.msk [vmem:[%s3 + $0x90] sm:$0xff] %vm78, %v1584
  %1649 = vst.msk [vmem:[%s3 + $0x98] sm:$0xff] %vm78, %v1585
  %1650 = vst.msk [vmem:[%s3 + $0xa0] sm:$0xff] %vm78, %v1586
  %1651 = vst.msk [vmem:[%s3 + $0xa8] sm:$0xff] %vm78, %v1587
  %1652 = vst.msk [vmem:[%s3 + $0xb0] sm:$0xff] %vm78, %v1588
  %1653 = vst.msk [vmem:[%s3 + $0xb8] sm:$0xff] %vm78, %v1589
  %1654 = vst.msk [vmem:[%s3 + $0xc0] sm:$0xff] %vm78, %v1590
  %1655 = vst.msk [vmem:[%s3 + $0xc8] sm:$0xff] %vm78, %v1591
  %1656 = vst.msk [vmem:[%s3 + $0xd0] sm:$0xff] %vm78, %v1592
  %1657 = vst.msk [vmem:[%s3 + $0xd8] sm:$0xff] %vm78, %v1593
  %1658 = vst.msk [vmem:[%s3 + $0xe0] sm:$0xff] %vm78, %v1594
  %1659 = vst.msk [vmem:[%s3 + $0xe8] sm:$0xff] %vm78, %v1595
  %1660 = vst.msk [vmem:[%s3 + $0xf0] sm:$0xff] %vm78, %v1596
  %1661 = vst.msk [vmem:[%s3 + $0xf8] sm:$0xff] %vm78, %v1597
  %1662 = vst.msk [vmem:[%s3 + $0x100] sm:$0xff] %vm78, %v1598
  %1663 = vst.msk [vmem:[%s3 + $0x108] sm:$0xff] %vm78, %v1599
  %1664 = vst.msk [vmem:[%s3 + $0x110] sm:$0xff] %vm78, %v1600
  %1665 = vst.msk [vmem:[%s3 + $0x118] sm:$0xff] %vm78, %v1601
  %1666 = vst.msk [vmem:[%s3 + $0x120] sm:$0xff] %vm78, %v1602
  %1667 = vst.msk [vmem:[%s3 + $0x128] sm:$0xff] %vm78, %v1603
  %1668 = vst.msk [vmem:[%s3 + $0x130] sm:$0xff] %vm78, %v1604
  %1669 = vst.msk [vmem:[%s3 + $0x138] sm:$0xff] %vm78, %v1605
  %1670 = vst.msk [vmem:[%s3 + $0x140] sm:$0xff] %vm78, %v1606
  %1671 = vst.msk [vmem:[%s3 + $0x148] sm:$0xff] %vm78, %v1607
  %1672 = vst.msk [vmem:[%s3 + $0x150] sm:$0xff] %vm78, %v1608
  %1673 = vst.msk [vmem:[%s3 + $0x158] sm:$0xff] %vm78, %v1609
  %1674 = vst.msk [vmem:[%s3 + $0x160] sm:$0xff] %vm78, %v1610
  %1675 = vst.msk [vmem:[%s3 + $0x168] sm:$0xff] %vm78, %v1611
  %1676 = vst.msk [vmem:[%s3 + $0x170] sm:$0xff] %vm78, %v1612
  %1677 = vst.msk [vmem:[%s3 + $0x178] sm:$0xff] %vm78, %v1613
  %1678 = vst.msk [vmem:[%s3 + $0x180] sm:$0xff] %vm78, %v1614
  %1679 = vst.msk [vmem:[%s3 + $0x188] sm:$0xff] %vm78, %v1615
  %1680 = vst.msk [vmem:[%s3 + $0x190] sm:$0xff] %vm78, %v1616
  %1681 = vst.msk [vmem:[%s3 + $0x198] sm:$0xff] %vm78, %v1617
  %1682 = vst.msk [vmem:[%s3 + $0x1a0] sm:$0xff] %vm78, %v1618
  %1683 = vst.msk [vmem:[%s3 + $0x1a8] sm:$0xff] %vm78, %v1619
  %1684 = vst.msk [vmem:[%s3 + $0x1b0] sm:$0xff] %vm78, %v1620
  %1685 = vst.msk [vmem:[%s3 + $0x1b8] sm:$0xff] %vm78, %v1621
  %1686 = vst.msk [vmem:[%s3 + $0x1c0] sm:$0xff] %vm78, %v1622
  %1687 = vst.msk [vmem:[%s3 + $0x1c8] sm:$0xff] %vm78, %v1623
  %1688 = vst.msk [vmem:[%s3 + $0x1d0] sm:$0xff] %vm78, %v1624
  %1689 = vst.msk [vmem:[%s3 + $0x1d8] sm:$0xff] %vm78, %v1625
  %1690 = vst.msk [vmem:[%s3 + $0x1e0] sm:$0xff] %vm78, %v1626
  %1691 = vst.msk [vmem:[%s3 + $0x1e8] sm:$0xff] %vm78, %v1627
  %1692 = vst.msk [vmem:[%s3 + $0x1f0] sm:$0xff] %vm78, %v1628
  %1693 = vst.msk [vmem:[%s3 + $0x1f8] sm:$0xff] %vm78, %v1629
  // Predicated region
  $region14: #{tpu_custom_call.1} parent=0 // pred_check
    _
  $region15: #{tpu_custom_call.1} parent=0 // pred_check_branch
    %1695 = sbr.rel (0) target = $region17
  $region16: #{tpu_custom_call.1} parent=0 // pred_region
    _
  $region17: #{tpu_custom_call.1} parent=0 // pred_fallthru
    _
  // Predicated region
  $region18: #{tpu_custom_call.1} parent=0 // pred_check
    _
  $region19: #{tpu_custom_call.1} parent=0 // pred_check_branch
    %1697 = sbr.rel (0) target = $region21
  $region20: #{tpu_custom_call.1} parent=0 // pred_region
    _
  $region21: #{tpu_custom_call.1} parent=0 // pred_fallthru
    _

</llo_original>
